<compile_context>
chip_gen: v5e
topology: v5e:2x2
jax: 0.10.0
libtpu: 0.0.40
codegen_flags: <defaults>
</compile_context>

<pallas_src>
import functools

import jax
import jax.numpy as jnp
from jax import lax
from jax.experimental import pallas as pl
from jax.experimental.pallas import tpu as pltpu


def _round_up(x, m):
    return ((x + m - 1) // m) * m


def _make_speaker_kernel(num_layers, B_BLK, E, H, Vp, temp, hard, out_dtype):
    inv_temp = float(1.0 / temp)

    def kernel(h_img_ref, emb_ref, whv_ref, bhv_ref, gumbel_ref, *rest):
        layer_refs = rest[: 4 * num_layers]
        logits_ref = rest[4 * num_layers]          # (1, B_BLK, Vp) streamed output block
        hid_ref = rest[4 * num_layers + 1]         # (num_layers, B_BLK, H) persistent scratch

        def gru_stack(x, hid):
            # One time-step of the stacked GRU with gate-fused matmuls.
            # x: (B_BLK, in_dim); hid: list of (B_BLK, H) f32 values.
            new_hid = []
            for l in range(num_layers):
                w_ih, w_hh, b_x, b_hn = layer_refs[4 * l: 4 * l + 4]
                h = hid[l]
                gx = jnp.dot(x.astype(jnp.bfloat16), w_ih[...],
                             preferred_element_type=jnp.float32) + b_x[...]
                gh = jnp.dot(h.astype(jnp.bfloat16), w_hh[...],
                             preferred_element_type=jnp.float32)
                r = jax.nn.sigmoid(gx[:, :H] + gh[:, :H])
                z = jax.nn.sigmoid(gx[:, H:2 * H] + gh[:, H:2 * H])
                n = jnp.tanh(gx[:, 2 * H:] + r * (gh[:, 2 * H:] + b_hn[...]))
                h = (1.0 - z) * n + z * h
                new_hid.append(h)
                x = h
            return new_hid

        step = pl.program_id(1)

        @pl.when(step == 0)
        def _prologue():
            # h_img.view(1,B,H).repeat(num_layers,1,1) + BOS (token id 2) GRU step.
            h0 = h_img_ref[...]
            x0 = jnp.broadcast_to(emb_ref[pl.ds(2, 1), :], (B_BLK, E))
            hid0 = gru_stack(x0, [h0] * num_layers)
            for l in range(num_layers):
                hid_ref[l] = hid0[l]

        hid = [hid_ref[l] for l in range(num_layers)]
        out = hid[-1]                                       # top-layer GRU output

        logit = jnp.dot(out.astype(jnp.bfloat16), whv_ref[...],
                        preferred_element_type=jnp.float32) + bhv_ref[...]
        # step-0 token-3 mask and vocab/batch padding are already baked into gumbel
        y = logit + gumbel_ref[0]
        col = lax.broadcasted_iota(jnp.int32, (B_BLK, Vp), 1)
        if hard:
            # Straight-through hard sample: forward value is the one-hot argmax.
            # The softmax and the positive 1/temp scale are argmax-invariant -> skipped.
            # Tie-break min-reduce matches jnp.argmax's first-max semantics exactly.
            ymax = jnp.max(y, axis=-1, keepdims=True)
            idx = jnp.min(jnp.where(y == ymax, col, Vp), axis=-1, keepdims=True)
            c = (col == idx).astype(jnp.float32)
        else:
            ys = y * inv_temp
            m = jnp.max(ys, axis=-1, keepdims=True)
            e = jnp.exp(ys - m)
            c = e * pl.reciprocal(jnp.sum(e, axis=-1, keepdims=True), approx=True)

        logits_ref[0] = c.astype(out_dtype)                 # lane-dense (B_BLK, Vp) store

        # soft embedding lookup: (B_BLK, Vp) @ (Vp, E)
        x = jnp.dot(c.astype(jnp.bfloat16), emb_ref[...],
                    preferred_element_type=jnp.float32)
        new_hid = gru_stack(x, hid)
        for l in range(num_layers):
            hid_ref[l] = new_hid[l]

    return kernel


def pack_speaker_params(params):
    """Host-side packing: fused bf16 gate weights, pre-added biases, V lane-padded."""
    emb = params["emb"]
    V, E = emb.shape
    H = params["whv"].shape[0]
    Vp = max(128, _round_up(V, 128))

    emb_p = jnp.zeros((Vp, E), jnp.float32).at[:V].set(emb).astype(jnp.bfloat16)
    whv_p = jnp.zeros((H, Vp), jnp.float32).at[:, :V].set(params["whv"]).astype(jnp.bfloat16)
    bhv_p = jnp.zeros((1, Vp), jnp.float32).at[:, :V].set(params["bhv"])

    layer_arrays = []
    for (wih, whh, bih, bhh) in params["layers"]:
        w_ih = jnp.concatenate([wih[0], wih[1], wih[2]], axis=1).astype(jnp.bfloat16)   # (in, 3H)
        w_hh = jnp.concatenate([whh[0], whh[1], whh[2]], axis=1).astype(jnp.bfloat16)   # (H, 3H)
        b_x = jnp.concatenate([bih[0] + bhh[0], bih[1] + bhh[1], bih[2]], axis=1)       # (1, 3H)
        b_hn = bhh[2]                                                                    # (1, H)
        layer_arrays += [w_ih, w_hh, b_x, b_hn]
    return emb_p, whv_p, bhv_p, layer_arrays, Vp


def speaker_rollout(params, h_img, gumbel, *, num_layers, seq_len, temp, hard):
    B, H = h_img.shape
    V, E = params["emb"].shape
    emb_p, whv_p, bhv_p, layer_arrays, Vp = pack_speaker_params(params)

    # Fill sublanes: pad the batch to a multiple of 8 and (optionally) split across
    # batch blocks so the two v7x TensorCores each take part of the batch.
    B_BLK = 8
    Bp = max(B_BLK, _round_up(B, B_BLK))
    n_bblk = Bp // B_BLK

    h_img_p = jnp.zeros((Bp, H), jnp.float32).at[:B].set(h_img)

    # Pad vocab axis of gumbel with -1e30 (padded tokens never win), pad batch rows
    # likewise, and hoist the idx_==0 "forbid token 3" mask onto the step-0 slice.
    gumbel_p = jnp.full((seq_len, Bp, Vp), -1e30, jnp.float32)
    gumbel_p = gumbel_p.at[:, :B, :V].set(gumbel)
    gumbel_p = gumbel_p.at[0, :, 3].set(-1e30)

    # hard one-hot values are exactly representable in bf16 -> halve HBM writeback.
    out_dtype = jnp.bfloat16 if hard else jnp.float32
    out_itemsize = jnp.dtype(out_dtype).itemsize

    inputs = [h_img_p, emb_p, whv_p, bhv_p, gumbel_p] + layer_arrays

    in_specs = [
        pl.BlockSpec((B_BLK, H), lambda b, s: (b, 0)),            # h_img (per batch block)
        pl.BlockSpec(emb_p.shape, lambda b, s: (0, 0)),           # emb (resident)
        pl.BlockSpec(whv_p.shape, lambda b, s: (0, 0)),           # hid_to_voc weight
        pl.BlockSpec(bhv_p.shape, lambda b, s: (0, 0)),           # hid_to_voc bias
        pl.BlockSpec((1, B_BLK, Vp), lambda b, s: (s, b, 0)),     # gumbel, streamed per step
    ] + [pl.BlockSpec(w.shape, lambda b, s: (0, 0)) for w in layer_arrays]

    out_specs = pl.BlockSpec((1, B_BLK, Vp), lambda b, s: (s, b, 0))

    kernel = _make_speaker_kernel(num_layers, B_BLK, E, H, Vp, temp, hard, out_dtype)

    weight_bytes = sum(int(x.size) * x.dtype.itemsize
                       for x in [emb_p, whv_p, bhv_p] + layer_arrays)
    stream_bytes = (2 * B_BLK * Vp * 4            # double-buffered gumbel blocks
                    + 2 * B_BLK * Vp * out_itemsize   # double-buffered output blocks
                    + 2 * B_BLK * H * 4)          # h_img block
    scratch_bytes = num_layers * B_BLK * H * 4
    # Cap below physical VMEM on v7x (64 MiB) to leave compiler headroom.
    vmem_limit = int(min(48 * 1024 * 1024,
                         max(16 * 1024 * 1024,
                             2 * (weight_bytes + stream_bytes + scratch_bytes))))

    logits_pad = pl.pallas_call(
        kernel,
        out_shape=jax.ShapeDtypeStruct((seq_len, Bp, Vp), out_dtype),
        grid=(n_bblk, seq_len),
        in_specs=in_specs,
        out_specs=out_specs,
        scratch_shapes=[pltpu.VMEM((num_layers, B_BLK, H), jnp.float32)],
        compiler_params=pltpu.CompilerParams(
            dimension_semantics=("parallel", "arbitrary"),
            vmem_limit_bytes=vmem_limit),
    )(*inputs)

    return logits_pad[:, :B, :V].astype(jnp.float32)


def speaker_postprocess(logits_sbv):
    """EOS / padding bookkeeping (plain-JAX glue, matches the torch epilogue)."""
    S, B, V = logits_sbv.shape
    logits = jnp.transpose(logits_sbv, (1, 0, 2))                  # (B, S, V)
    labels = jnp.argmax(logits, axis=-1).astype(jnp.int32)         # == comm_label_ per step
    onehot3 = jnp.zeros((V,), jnp.float32).at[3].set(1.0)
    logits = logits.at[:, -1, :].set(onehot3)
    labels = labels.at[:, -1].set(3)
    pad_g = jnp.cumsum((labels == 3).astype(jnp.int32), axis=1) == 0
    labels = jnp.where(pad_g, labels, 0)
    pad = jnp.zeros_like(logits).at[:, :, 0].set(1.0)
    logits = jnp.where(pad_g[:, :, None], logits, pad)
    cap_len = jnp.max(jnp.cumsum(pad_g.astype(jnp.int32), axis=1), axis=1) + 1
    return logits, labels, cap_len


def speaker_reference(params, h_img, gumbel, *, num_layers, seq_len, temp, hard):
    """Pure-JAX reference of the rollout with the same bf16 operand precision."""
    B, H = h_img.shape
    emb = params["emb"]
    V, E = emb.shape
    inv_temp = 1.0 / temp
    emb_b = emb.astype(jnp.bfloat16)
    whv_b = params["whv"].astype(jnp.bfloat16)
    gum = gumbel.at[0, :, 3].set(-1e30)        # same hoisted step-0 mask as the kernel

    cat = []
    for (wih, whh, bih, bhh) in params["layers"]:
        cat.append((jnp.concatenate([wih[0], wih[1], wih[2]], axis=1).astype(jnp.bfloat16),
                    jnp.concatenate([whh[0], whh[1], whh[2]], axis=1).astype(jnp.bfloat16),
                    jnp.concatenate([bih[0] + bhh[0], bih[1] + bhh[1], bih[2]], axis=1),
                    bhh[2]))

    def gru_stack(x, hid):
        new_hid = []
        for l in range(num_layers):
            w_ih, w_hh, b_x, b_hn = cat[l]
            h = hid[l]
            gx = jnp.dot(x.astype(jnp.bfloat16), w_ih, preferred_element_type=jnp.float32) + b_x
            gh = jnp.dot(h.astype(jnp.bfloat16), w_hh, preferred_element_type=jnp.float32)
            r = jax.nn.sigmoid(gx[:, :H] + gh[:, :H])
            z = jax.nn.sigmoid(gx[:, H:2 * H] + gh[:, H:2 * H])
            n = jnp.tanh(gx[:, 2 * H:] + r * (gh[:, 2 * H:] + b_hn))
            h = (1.0 - z) * n + z * h
            new_hid.append(h)
            x = h
        return new_hid

    hid = [h_img] * num_layers
    hid = gru_stack(jnp.broadcast_to(emb_b[2:3], (B, E)), hid)
    outs = []
    for step in range(seq_len):
        out = hid[-1]
        logit = jnp.dot(out.astype(jnp.bfloat16), whv_b,
                        preferred_element_type=jnp.float32) + params["bhv"]
        y = (logit + gum[step]) * inv_temp
        if hard:
            c = jax.nn.one_hot(jnp.argmax(y, axis=-1), V, dtype=jnp.float32)
        else:
            c = jax.nn.softmax(y, axis=-1)
        outs.append(c)
        hid = gru_stack(jnp.dot(c.astype(jnp.bfloat16), emb_b,
                                preferred_element_type=jnp.float32), hid)
    return jnp.stack(outs, axis=0)


if __name__ == "__main__":
    # small but representative config (args.*)
    B, D_emb, D_hid, vocab_size = 4, 32, 32, 16
    seq_len, num_layers = 6, 2
    temp, hard = 1.0, True

    key = jax.random.PRNGKey(0)
    ks = jax.random.split(key, 16)

    emb = 0.1 * jax.random.normal(ks[0], (vocab_size, D_emb), jnp.float32)
    emb = emb.at[0].set(0.0)                                   # padding_idx=0
    whv = 0.1 * jax.random.normal(ks[1], (D_hid, vocab_size), jnp.float32)
    bhv = 0.1 * jax.random.normal(ks[2], (1, vocab_size), jnp.float32)
    layers = []
    for l in range(num_layers):
        in_dim = D_emb if l == 0 else D_hid
        kk = jax.random.split(ks[3 + l], 4)
        layers.append((
            0.2 * jax.random.normal(kk[0], (3, in_dim, D_hid), jnp.float32),
            0.2 * jax.random.normal(kk[1], (3, D_hid, D_hid), jnp.float32),
            0.1 * jax.random.normal(kk[2], (3, 1, D_hid), jnp.float32),
            0.1 * jax.random.normal(kk[3], (3, 1, D_hid), jnp.float32),
        ))
    params = {"emb": emb, "whv": whv, "bhv": bhv, "layers": layers}

    h_img = jax.random.normal(ks[8], (B, D_hid), jnp.float32)
    # deterministic stand-in for torch's in-place uniform_ gumbel sampling
    u = jax.random.uniform(ks[9], (seq_len, B, vocab_size), jnp.float32,
                           minval=1e-6, maxval=1.0)
    gumbel = -jnp.log(-jnp.log(u + 1e-20) + 1e-20)

    run = functools.partial(speaker_rollout, num_layers=num_layers,
                            seq_len=seq_len, temp=temp, hard=hard)
    logits_sbv = run(params, h_img, gumbel)
    jax.block_until_ready(logits_sbv)

    ref_sbv = speaker_reference(params, h_img, gumbel, num_layers=num_layers,
                                seq_len=seq_len, temp=temp, hard=hard)
    if not bool(jnp.allclose(logits_sbv, ref_sbv, atol=1e-3)):
        raise AssertionError(
            f"kernel/reference mismatch, max|diff|="
            f"{float(jnp.max(jnp.abs(logits_sbv - ref_sbv)))}")

    logits, labels, cap_len = speaker_postprocess(logits_sbv)
    jax.block_until_ready((logits, labels, cap_len))
    assert logits.shape == (B, seq_len, vocab_size)
    assert labels.shape == (B, seq_len)
    assert cap_len.shape == (B,)
    print("KERNEL_OK")
</pallas_src>

<mosaic_0001>
module attributes {stable_mosaic.version = 11 : i64} {
  func.func @kernel(%arg0: i32, %arg1: i32, %arg2: memref<8x32xf32, #tpu.memory_space<vmem>>, %arg3: memref<128x32xbf16, #tpu.memory_space<vmem>>, %arg4: memref<32x128xbf16, #tpu.memory_space<vmem>>, %arg5: memref<1x128xf32, #tpu.memory_space<vmem>>, %arg6: memref<1x8x128xf32, #tpu.memory_space<vmem>>, %arg7: memref<32x96xbf16, #tpu.memory_space<vmem>>, %arg8: memref<32x96xbf16, #tpu.memory_space<vmem>>, %arg9: memref<1x96xf32, #tpu.memory_space<vmem>>, %arg10: memref<1x32xf32, #tpu.memory_space<vmem>>, %arg11: memref<32x96xbf16, #tpu.memory_space<vmem>>, %arg12: memref<32x96xbf16, #tpu.memory_space<vmem>>, %arg13: memref<1x96xf32, #tpu.memory_space<vmem>>, %arg14: memref<1x32xf32, #tpu.memory_space<vmem>>, %arg15: memref<1x8x128xbf16, #tpu.memory_space<vmem>>, %arg16: memref<2x8x32xf32, #tpu.memory_space<vmem>>) attributes {dimension_semantics = [#tpu.dimension_semantics<parallel>, #tpu.dimension_semantics<arbitrary>], iteration_bounds = array<i64: 1, 6>, scalar_prefetch = 0 : i64, scratch_operands = 1 : i64, tpu.core_type = #tpu.core_type<tc>, window_params = [{transform_indices = @transform_0, window_bounds = array<i64: 8, 32>}, {pipeline_mode = #tpu.pipeline_mode<synchronous>, transform_indices = @transform_1, window_bounds = array<i64: 128, 32>}, {pipeline_mode = #tpu.pipeline_mode<synchronous>, transform_indices = @transform_2, window_bounds = array<i64: 32, 128>}, {pipeline_mode = #tpu.pipeline_mode<synchronous>, transform_indices = @transform_3, window_bounds = array<i64: 1, 128>}, {transform_indices = @transform_4, window_bounds = array<i64: 1, 8, 128>}, {pipeline_mode = #tpu.pipeline_mode<synchronous>, transform_indices = @transform_5, window_bounds = array<i64: 32, 96>}, {pipeline_mode = #tpu.pipeline_mode<synchronous>, transform_indices = @transform_6, window_bounds = array<i64: 32, 96>}, {pipeline_mode = #tpu.pipeline_mode<synchronous>, transform_indices = @transform_7, window_bounds = array<i64: 1, 96>}, {pipeline_mode = #tpu.pipeline_mode<synchronous>, transform_indices = @transform_8, window_bounds = array<i64: 1, 32>}, {pipeline_mode = #tpu.pipeline_mode<synchronous>, transform_indices = @transform_9, window_bounds = array<i64: 32, 96>}, {pipeline_mode = #tpu.pipeline_mode<synchronous>, transform_indices = @transform_10, window_bounds = array<i64: 32, 96>}, {pipeline_mode = #tpu.pipeline_mode<synchronous>, transform_indices = @transform_11, window_bounds = array<i64: 1, 96>}, {pipeline_mode = #tpu.pipeline_mode<synchronous>, transform_indices = @transform_12, window_bounds = array<i64: 1, 32>}, {transform_indices = @transform_13, window_bounds = array<i64: 1, 8, 128>}]} {
    %c0_i32 = arith.constant 0 : i32
    %0 = arith.cmpi eq, %arg1, %c0_i32 : i32
    %1 = arith.extui %0 : i1 to i32
    %c0_i32_0 = arith.constant 0 : i32
    %2 = arith.cmpi ne, %1, %c0_i32_0 : i32
    scf.if %2 {
      %c0_52 = arith.constant 0 : index
      %c0_53 = arith.constant 0 : index
      %118 = vector.load %arg2[%c0_52, %c0_53] : memref<8x32xf32, #tpu.memory_space<vmem>>, vector<8x32xf32>
      %c2 = arith.constant 2 : index
      %c0_54 = arith.constant 0 : index
      %119 = vector.load %arg3[%c2, %c0_54] : memref<128x32xbf16, #tpu.memory_space<vmem>>, vector<1x32xbf16>
      %120 = vector.shape_cast %119 : vector<1x32xbf16> to vector<1x32xbf16>
      %121 = vector.broadcast %120 : vector<1x32xbf16> to vector<8x32xbf16>
      %c0_55 = arith.constant 0 : index
      %c0_56 = arith.constant 0 : index
      %122 = vector.load %arg7[%c0_55, %c0_56] : memref<32x96xbf16, #tpu.memory_space<vmem>>, vector<32x96xbf16>
      %cst_57 = arith.constant dense<0.000000e+00> : vector<8x96xf32>
      %123 = tpu.matmul %121, %122, %cst_57 {dimension_numbers = #tpu.dot_dimension_numbers<[1], [0], [0], [1], [0, 0, 1, 1], [], []>} : vector<8x32xbf16>, vector<32x96xbf16>, vector<8x96xf32> -> vector<8x96xf32>
      %c0_58 = arith.constant 0 : index
      %c0_59 = arith.constant 0 : index
      %124 = vector.load %arg9[%c0_58, %c0_59] : memref<1x96xf32, #tpu.memory_space<vmem>>, vector<1x96xf32>
      %125 = vector.broadcast %124 : vector<1x96xf32> to vector<8x96xf32>
      %126 = arith.addf %123, %125 : vector<8x96xf32>
      %127 = arith.truncf %118 : vector<8x32xf32> to vector<8x32xbf16>
      %c0_60 = arith.constant 0 : index
      %c0_61 = arith.constant 0 : index
      %128 = vector.load %arg8[%c0_60, %c0_61] : memref<32x96xbf16, #tpu.memory_space<vmem>>, vector<32x96xbf16>
      %cst_62 = arith.constant dense<0.000000e+00> : vector<8x96xf32>
      %129 = tpu.matmul %127, %128, %cst_62 {dimension_numbers = #tpu.dot_dimension_numbers<[1], [0], [0], [1], [0, 0, 1, 1], [], []>} : vector<8x32xbf16>, vector<32x96xbf16>, vector<8x96xf32> -> vector<8x96xf32>
      %130 = vector.extract_strided_slice %126 {offsets = [0, 0], sizes = [8, 32], strides = [1, 1]} : vector<8x96xf32> to vector<8x32xf32>
      %131 = vector.extract_strided_slice %129 {offsets = [0, 0], sizes = [8, 32], strides = [1, 1]} : vector<8x96xf32> to vector<8x32xf32>
      %132 = arith.addf %130, %131 : vector<8x32xf32>
      %133 = arith.negf %132 : vector<8x32xf32>
      %134 = math.exp %133 : vector<8x32xf32>
      %cst_63 = arith.constant 1.000000e+00 : f32
      %135 = vector.broadcast %cst_63 : f32 to vector<8x32xf32>
      %136 = arith.addf %135, %134 : vector<8x32xf32>
      %137 = arith.divf %135, %136 : vector<8x32xf32>
      %138 = vector.extract_strided_slice %126 {offsets = [0, 32], sizes = [8, 32], strides = [1, 1]} : vector<8x96xf32> to vector<8x32xf32>
      %139 = vector.extract_strided_slice %129 {offsets = [0, 32], sizes = [8, 32], strides = [1, 1]} : vector<8x96xf32> to vector<8x32xf32>
      %140 = arith.addf %138, %139 : vector<8x32xf32>
      %141 = arith.negf %140 : vector<8x32xf32>
      %142 = math.exp %141 : vector<8x32xf32>
      %cst_64 = arith.constant 1.000000e+00 : f32
      %143 = vector.broadcast %cst_64 : f32 to vector<8x32xf32>
      %144 = arith.addf %143, %142 : vector<8x32xf32>
      %145 = arith.divf %143, %144 : vector<8x32xf32>
      %146 = vector.extract_strided_slice %126 {offsets = [0, 64], sizes = [8, 32], strides = [1, 1]} : vector<8x96xf32> to vector<8x32xf32>
      %147 = vector.extract_strided_slice %129 {offsets = [0, 64], sizes = [8, 32], strides = [1, 1]} : vector<8x96xf32> to vector<8x32xf32>
      %c0_65 = arith.constant 0 : index
      %c0_66 = arith.constant 0 : index
      %148 = vector.load %arg10[%c0_65, %c0_66] : memref<1x32xf32, #tpu.memory_space<vmem>>, vector<1x32xf32>
      %149 = vector.broadcast %148 : vector<1x32xf32> to vector<8x32xf32>
      %150 = arith.addf %147, %149 : vector<8x32xf32>
      %151 = arith.mulf %137, %150 : vector<8x32xf32>
      %152 = arith.addf %146, %151 : vector<8x32xf32>
      %153 = math.tanh %152 : vector<8x32xf32>
      %cst_67 = arith.constant 1.000000e+00 : f32
      %154 = vector.broadcast %cst_67 : f32 to vector<8x32xf32>
      %155 = arith.subf %154, %145 : vector<8x32xf32>
      %156 = arith.mulf %155, %153 : vector<8x32xf32>
      %157 = arith.mulf %145, %118 : vector<8x32xf32>
      %158 = arith.addf %156, %157 : vector<8x32xf32>
      %159 = arith.truncf %158 : vector<8x32xf32> to vector<8x32xbf16>
      %c0_68 = arith.constant 0 : index
      %c0_69 = arith.constant 0 : index
      %160 = vector.load %arg11[%c0_68, %c0_69] : memref<32x96xbf16, #tpu.memory_space<vmem>>, vector<32x96xbf16>
      %cst_70 = arith.constant dense<0.000000e+00> : vector<8x96xf32>
      %161 = tpu.matmul %159, %160, %cst_70 {dimension_numbers = #tpu.dot_dimension_numbers<[1], [0], [0], [1], [0, 0, 1, 1], [], []>} : vector<8x32xbf16>, vector<32x96xbf16>, vector<8x96xf32> -> vector<8x96xf32>
      %c0_71 = arith.constant 0 : index
      %c0_72 = arith.constant 0 : index
      %162 = vector.load %arg13[%c0_71, %c0_72] : memref<1x96xf32, #tpu.memory_space<vmem>>, vector<1x96xf32>
      %163 = vector.broadcast %162 : vector<1x96xf32> to vector<8x96xf32>
      %164 = arith.addf %161, %163 : vector<8x96xf32>
      %165 = arith.truncf %118 : vector<8x32xf32> to vector<8x32xbf16>
      %c0_73 = arith.constant 0 : index
      %c0_74 = arith.constant 0 : index
      %166 = vector.load %arg12[%c0_73, %c0_74] : memref<32x96xbf16, #tpu.memory_space<vmem>>, vector<32x96xbf16>
      %cst_75 = arith.constant dense<0.000000e+00> : vector<8x96xf32>
      %167 = tpu.matmul %165, %166, %cst_75 {dimension_numbers = #tpu.dot_dimension_numbers<[1], [0], [0], [1], [0, 0, 1, 1], [], []>} : vector<8x32xbf16>, vector<32x96xbf16>, vector<8x96xf32> -> vector<8x96xf32>
      %168 = vector.extract_strided_slice %164 {offsets = [0, 0], sizes = [8, 32], strides = [1, 1]} : vector<8x96xf32> to vector<8x32xf32>
      %169 = vector.extract_strided_slice %167 {offsets = [0, 0], sizes = [8, 32], strides = [1, 1]} : vector<8x96xf32> to vector<8x32xf32>
      %170 = arith.addf %168, %169 : vector<8x32xf32>
      %171 = arith.negf %170 : vector<8x32xf32>
      %172 = math.exp %171 : vector<8x32xf32>
      %cst_76 = arith.constant 1.000000e+00 : f32
      %173 = vector.broadcast %cst_76 : f32 to vector<8x32xf32>
      %174 = arith.addf %173, %172 : vector<8x32xf32>
      %175 = arith.divf %173, %174 : vector<8x32xf32>
      %176 = vector.extract_strided_slice %164 {offsets = [0, 32], sizes = [8, 32], strides = [1, 1]} : vector<8x96xf32> to vector<8x32xf32>
      %177 = vector.extract_strided_slice %167 {offsets = [0, 32], sizes = [8, 32], strides = [1, 1]} : vector<8x96xf32> to vector<8x32xf32>
      %178 = arith.addf %176, %177 : vector<8x32xf32>
      %179 = arith.negf %178 : vector<8x32xf32>
      %180 = math.exp %179 : vector<8x32xf32>
      %cst_77 = arith.constant 1.000000e+00 : f32
      %181 = vector.broadcast %cst_77 : f32 to vector<8x32xf32>
      %182 = arith.addf %181, %180 : vector<8x32xf32>
      %183 = arith.divf %181, %182 : vector<8x32xf32>
      %184 = vector.extract_strided_slice %164 {offsets = [0, 64], sizes = [8, 32], strides = [1, 1]} : vector<8x96xf32> to vector<8x32xf32>
      %185 = vector.extract_strided_slice %167 {offsets = [0, 64], sizes = [8, 32], strides = [1, 1]} : vector<8x96xf32> to vector<8x32xf32>
      %c0_78 = arith.constant 0 : index
      %c0_79 = arith.constant 0 : index
      %186 = vector.load %arg14[%c0_78, %c0_79] : memref<1x32xf32, #tpu.memory_space<vmem>>, vector<1x32xf32>
      %187 = vector.broadcast %186 : vector<1x32xf32> to vector<8x32xf32>
      %188 = arith.addf %185, %187 : vector<8x32xf32>
      %189 = arith.mulf %175, %188 : vector<8x32xf32>
      %190 = arith.addf %184, %189 : vector<8x32xf32>
      %191 = math.tanh %190 : vector<8x32xf32>
      %cst_80 = arith.constant 1.000000e+00 : f32
      %192 = vector.broadcast %cst_80 : f32 to vector<8x32xf32>
      %193 = arith.subf %192, %183 : vector<8x32xf32>
      %194 = arith.mulf %193, %191 : vector<8x32xf32>
      %195 = arith.mulf %183, %118 : vector<8x32xf32>
      %196 = arith.addf %194, %195 : vector<8x32xf32>
      %c0_81 = arith.constant 0 : index
      %c0_82 = arith.constant 0 : index
      %c0_83 = arith.constant 0 : index
      %197 = vector.load %arg16[%c0_81, %c0_82, %c0_83] : memref<2x8x32xf32, #tpu.memory_space<vmem>>, vector<1x8x32xf32>
      %198 = vector.shape_cast %197 : vector<1x8x32xf32> to vector<8x32xf32>
      %199 = vector.shape_cast %158 : vector<8x32xf32> to vector<1x8x32xf32>
      tpu.vector_store %arg16[%c0_81, %c0_82, %c0_83], %199 {strides = array<i32>} : memref<2x8x32xf32, #tpu.memory_space<vmem>>, vector<1x8x32xf32>,
      %c1_84 = arith.constant 1 : index
      %c0_85 = arith.constant 0 : index
      %c0_86 = arith.constant 0 : index
      %200 = vector.load %arg16[%c1_84, %c0_85, %c0_86] : memref<2x8x32xf32, #tpu.memory_space<vmem>>, vector<1x8x32xf32>
      %201 = vector.shape_cast %200 : vector<1x8x32xf32> to vector<8x32xf32>
      %202 = vector.shape_cast %196 : vector<8x32xf32> to vector<1x8x32xf32>
      tpu.vector_store %arg16[%c1_84, %c0_85, %c0_86], %202 {strides = array<i32>} : memref<2x8x32xf32, #tpu.memory_space<vmem>>, vector<1x8x32xf32>,
    } else {
    }
    %c0 = arith.constant 0 : index
    %c0_1 = arith.constant 0 : index
    %c0_2 = arith.constant 0 : index
    %3 = vector.load %arg16[%c0, %c0_1, %c0_2] : memref<2x8x32xf32, #tpu.memory_space<vmem>>, vector<1x8x32xf32>
    %4 = vector.shape_cast %3 : vector<1x8x32xf32> to vector<8x32xf32>
    %c1 = arith.constant 1 : index
    %c0_3 = arith.constant 0 : index
    %c0_4 = arith.constant 0 : index
    %5 = vector.load %arg16[%c1, %c0_3, %c0_4] : memref<2x8x32xf32, #tpu.memory_space<vmem>>, vector<1x8x32xf32>
    %6 = vector.shape_cast %5 : vector<1x8x32xf32> to vector<8x32xf32>
    %7 = arith.truncf %6 : vector<8x32xf32> to vector<8x32xbf16>
    %c0_5 = arith.constant 0 : index
    %c0_6 = arith.constant 0 : index
    %8 = vector.load %arg4[%c0_5, %c0_6] : memref<32x128xbf16, #tpu.memory_space<vmem>>, vector<32x128xbf16>
    %cst = arith.constant dense<0.000000e+00> : vector<8x128xf32>
    %9 = tpu.matmul %7, %8, %cst {dimension_numbers = #tpu.dot_dimension_numbers<[1], [0], [0], [1], [0, 0, 1, 1], [], []>} : vector<8x32xbf16>, vector<32x128xbf16>, vector<8x128xf32> -> vector<8x128xf32>
    %c0_7 = arith.constant 0 : index
    %c0_8 = arith.constant 0 : index
    %10 = vector.load %arg5[%c0_7, %c0_8] : memref<1x128xf32, #tpu.memory_space<vmem>>, vector<1x128xf32>
    %11 = vector.broadcast %10 : vector<1x128xf32> to vector<8x128xf32>
    %12 = arith.addf %9, %11 : vector<8x128xf32>
    %c0_9 = arith.constant 0 : index
    %c0_10 = arith.constant 0 : index
    %c0_11 = arith.constant 0 : index
    %13 = vector.load %arg6[%c0_9, %c0_10, %c0_11] : memref<1x8x128xf32, #tpu.memory_space<vmem>>, vector<1x8x128xf32>
    %14 = vector.shape_cast %13 : vector<1x8x128xf32> to vector<8x128xf32>
    %15 = arith.addf %12, %14 : vector<8x128xf32>
    %16 = tpu.iota {dimensions = array<i32: 1>} : vector<8x128xi32>
    %cst_12 = arith.constant dense<0xFF800000> : vector<8xf32>
    %17 = vector.multi_reduction <maximumf>, %15, %cst_12 [1] : vector<8x128xf32> to vector<8xf32>
    %18 = vector.shape_cast %17 : vector<8xf32> to vector<8x1xf32>
    %19 = vector.broadcast %18 : vector<8x1xf32> to vector<8x128xf32>
    %20 = arith.cmpf oeq, %15, %19 : vector<8x128xf32>
    %c128_i32 = arith.constant 128 : i32
    %21 = vector.broadcast %c128_i32 : i32 to vector<8x128xi32>
    %22 = arith.select %20, %16, %21 : vector<8x128xi1>, vector<8x128xi32>
    %cst_13 = arith.constant dense<2147483647> : vector<8xi32>
    %23 = vector.multi_reduction <minsi>, %22, %cst_13 [1] : vector<8x128xi32> to vector<8xi32>
    %24 = vector.shape_cast %23 : vector<8xi32> to vector<8x1xi32>
    %25 = vector.broadcast %24 : vector<8x1xi32> to vector<8x128xi32>
    %26 = arith.cmpi eq, %16, %25 : vector<8x128xi32>
    %27 = arith.extui %26 : vector<8x128xi1> to vector<8x128xi32>
    %28 = arith.sitofp %27 : vector<8x128xi32> to vector<8x128xf32>
    %29 = arith.truncf %28 : vector<8x128xf32> to vector<8x128xbf16>
    %c0_14 = arith.constant 0 : index
    %c0_15 = arith.constant 0 : index
    %c0_16 = arith.constant 0 : index
    %30 = vector.load %arg15[%c0_14, %c0_15, %c0_16] : memref<1x8x128xbf16, #tpu.memory_space<vmem>>, vector<1x8x128xbf16>
    %31 = vector.shape_cast %30 : vector<1x8x128xbf16> to vector<8x128xbf16>
    %32 = vector.shape_cast %29 : vector<8x128xbf16> to vector<1x8x128xbf16>
    tpu.vector_store %arg15[%c0_14, %c0_15, %c0_16], %32 {strides = array<i32>} : memref<1x8x128xbf16, #tpu.memory_space<vmem>>, vector<1x8x128xbf16>,
    %33 = arith.truncf %28 : vector<8x128xf32> to vector<8x128xbf16>
    %c0_17 = arith.constant 0 : index
    %c0_18 = arith.constant 0 : index
    %34 = vector.load %arg3[%c0_17, %c0_18] : memref<128x32xbf16, #tpu.memory_space<vmem>>, vector<128x32xbf16>
    %cst_19 = arith.constant dense<0.000000e+00> : vector<8x32xf32>
    %35 = tpu.matmul %33, %34, %cst_19 {dimension_numbers = #tpu.dot_dimension_numbers<[1], [0], [0], [1], [0, 0, 1, 1], [], []>} : vector<8x128xbf16>, vector<128x32xbf16>, vector<8x32xf32> -> vector<8x32xf32>
    %36 = arith.truncf %35 : vector<8x32xf32> to vector<8x32xbf16>
    %c0_20 = arith.constant 0 : index
    %c0_21 = arith.constant 0 : index
    %37 = vector.load %arg7[%c0_20, %c0_21] : memref<32x96xbf16, #tpu.memory_space<vmem>>, vector<32x96xbf16>
    %cst_22 = arith.constant dense<0.000000e+00> : vector<8x96xf32>
    %38 = tpu.matmul %36, %37, %cst_22 {dimension_numbers = #tpu.dot_dimension_numbers<[1], [0], [0], [1], [0, 0, 1, 1], [], []>} : vector<8x32xbf16>, vector<32x96xbf16>, vector<8x96xf32> -> vector<8x96xf32>
    %c0_23 = arith.constant 0 : index
    %c0_24 = arith.constant 0 : index
    %39 = vector.load %arg9[%c0_23, %c0_24] : memref<1x96xf32, #tpu.memory_space<vmem>>, vector<1x96xf32>
    %40 = vector.broadcast %39 : vector<1x96xf32> to vector<8x96xf32>
    %41 = arith.addf %38, %40 : vector<8x96xf32>
    %42 = arith.truncf %4 : vector<8x32xf32> to vector<8x32xbf16>
    %c0_25 = arith.constant 0 : index
    %c0_26 = arith.constant 0 : index
    %43 = vector.load %arg8[%c0_25, %c0_26] : memref<32x96xbf16, #tpu.memory_space<vmem>>, vector<32x96xbf16>
    %cst_27 = arith.constant dense<0.000000e+00> : vector<8x96xf32>
    %44 = tpu.matmul %42, %43, %cst_27 {dimension_numbers = #tpu.dot_dimension_numbers<[1], [0], [0], [1], [0, 0, 1, 1], [], []>} : vector<8x32xbf16>, vector<32x96xbf16>, vector<8x96xf32> -> vector<8x96xf32>
    %45 = vector.extract_strided_slice %41 {offsets = [0, 0], sizes = [8, 32], strides = [1, 1]} : vector<8x96xf32> to vector<8x32xf32>
    %46 = vector.extract_strided_slice %44 {offsets = [0, 0], sizes = [8, 32], strides = [1, 1]} : vector<8x96xf32> to vector<8x32xf32>
    %47 = arith.addf %45, %46 : vector<8x32xf32>
    %48 = arith.negf %47 : vector<8x32xf32>
    %49 = math.exp %48 : vector<8x32xf32>
    %cst_28 = arith.constant 1.000000e+00 : f32
    %50 = vector.broadcast %cst_28 : f32 to vector<8x32xf32>
    %51 = arith.addf %50, %49 : vector<8x32xf32>
    %52 = arith.divf %50, %51 : vector<8x32xf32>
    %53 = vector.extract_strided_slice %41 {offsets = [0, 32], sizes = [8, 32], strides = [1, 1]} : vector<8x96xf32> to vector<8x32xf32>
    %54 = vector.extract_strided_slice %44 {offsets = [0, 32], sizes = [8, 32], strides = [1, 1]} : vector<8x96xf32> to vector<8x32xf32>
    %55 = arith.addf %53, %54 : vector<8x32xf32>
    %56 = arith.negf %55 : vector<8x32xf32>
    %57 = math.exp %56 : vector<8x32xf32>
    %cst_29 = arith.constant 1.000000e+00 : f32
    %58 = vector.broadcast %cst_29 : f32 to vector<8x32xf32>
    %59 = arith.addf %58, %57 : vector<8x32xf32>
    %60 = arith.divf %58, %59 : vector<8x32xf32>
    %61 = vector.extract_strided_slice %41 {offsets = [0, 64], sizes = [8, 32], strides = [1, 1]} : vector<8x96xf32> to vector<8x32xf32>
    %62 = vector.extract_strided_slice %44 {offsets = [0, 64], sizes = [8, 32], strides = [1, 1]} : vector<8x96xf32> to vector<8x32xf32>
    %c0_30 = arith.constant 0 : index
    %c0_31 = arith.constant 0 : index
    %63 = vector.load %arg10[%c0_30, %c0_31] : memref<1x32xf32, #tpu.memory_space<vmem>>, vector<1x32xf32>
    %64 = vector.broadcast %63 : vector<1x32xf32> to vector<8x32xf32>
    %65 = arith.addf %62, %64 : vector<8x32xf32>
    %66 = arith.mulf %52, %65 : vector<8x32xf32>
    %67 = arith.addf %61, %66 : vector<8x32xf32>
    %68 = math.tanh %67 : vector<8x32xf32>
    %cst_32 = arith.constant 1.000000e+00 : f32
    %69 = vector.broadcast %cst_32 : f32 to vector<8x32xf32>
    %70 = arith.subf %69, %60 : vector<8x32xf32>
    %71 = arith.mulf %70, %68 : vector<8x32xf32>
    %72 = arith.mulf %60, %4 : vector<8x32xf32>
    %73 = arith.addf %71, %72 : vector<8x32xf32>
    %74 = arith.truncf %73 : vector<8x32xf32> to vector<8x32xbf16>
    %c0_33 = arith.constant 0 : index
    %c0_34 = arith.constant 0 : index
    %75 = vector.load %arg11[%c0_33, %c0_34] : memref<32x96xbf16, #tpu.memory_space<vmem>>, vector<32x96xbf16>
    %cst_35 = arith.constant dense<0.000000e+00> : vector<8x96xf32>
    %76 = tpu.matmul %74, %75, %cst_35 {dimension_numbers = #tpu.dot_dimension_numbers<[1], [0], [0], [1], [0, 0, 1, 1], [], []>} : vector<8x32xbf16>, vector<32x96xbf16>, vector<8x96xf32> -> vector<8x96xf32>
    %c0_36 = arith.constant 0 : index
    %c0_37 = arith.constant 0 : index
    %77 = vector.load %arg13[%c0_36, %c0_37] : memref<1x96xf32, #tpu.memory_space<vmem>>, vector<1x96xf32>
    %78 = vector.broadcast %77 : vector<1x96xf32> to vector<8x96xf32>
    %79 = arith.addf %76, %78 : vector<8x96xf32>
    %80 = arith.truncf %6 : vector<8x32xf32> to vector<8x32xbf16>
    %c0_38 = arith.constant 0 : index
    %c0_39 = arith.constant 0 : index
    %81 = vector.load %arg12[%c0_38, %c0_39] : memref<32x96xbf16, #tpu.memory_space<vmem>>, vector<32x96xbf16>
    %cst_40 = arith.constant dense<0.000000e+00> : vector<8x96xf32>
    %82 = tpu.matmul %80, %81, %cst_40 {dimension_numbers = #tpu.dot_dimension_numbers<[1], [0], [0], [1], [0, 0, 1, 1], [], []>} : vector<8x32xbf16>, vector<32x96xbf16>, vector<8x96xf32> -> vector<8x96xf32>
    %83 = vector.extract_strided_slice %79 {offsets = [0, 0], sizes = [8, 32], strides = [1, 1]} : vector<8x96xf32> to vector<8x32xf32>
    %84 = vector.extract_strided_slice %82 {offsets = [0, 0], sizes = [8, 32], strides = [1, 1]} : vector<8x96xf32> to vector<8x32xf32>
    %85 = arith.addf %83, %84 : vector<8x32xf32>
    %86 = arith.negf %85 : vector<8x32xf32>
    %87 = math.exp %86 : vector<8x32xf32>
    %cst_41 = arith.constant 1.000000e+00 : f32
    %88 = vector.broadcast %cst_41 : f32 to vector<8x32xf32>
    %89 = arith.addf %88, %87 : vector<8x32xf32>
    %90 = arith.divf %88, %89 : vector<8x32xf32>
    %91 = vector.extract_strided_slice %79 {offsets = [0, 32], sizes = [8, 32], strides = [1, 1]} : vector<8x96xf32> to vector<8x32xf32>
    %92 = vector.extract_strided_slice %82 {offsets = [0, 32], sizes = [8, 32], strides = [1, 1]} : vector<8x96xf32> to vector<8x32xf32>
    %93 = arith.addf %91, %92 : vector<8x32xf32>
    %94 = arith.negf %93 : vector<8x32xf32>
    %95 = math.exp %94 : vector<8x32xf32>
    %cst_42 = arith.constant 1.000000e+00 : f32
    %96 = vector.broadcast %cst_42 : f32 to vector<8x32xf32>
    %97 = arith.addf %96, %95 : vector<8x32xf32>
    %98 = arith.divf %96, %97 : vector<8x32xf32>
    %99 = vector.extract_strided_slice %79 {offsets = [0, 64], sizes = [8, 32], strides = [1, 1]} : vector<8x96xf32> to vector<8x32xf32>
    %100 = vector.extract_strided_slice %82 {offsets = [0, 64], sizes = [8, 32], strides = [1, 1]} : vector<8x96xf32> to vector<8x32xf32>
    %c0_43 = arith.constant 0 : index
    %c0_44 = arith.constant 0 : index
    %101 = vector.load %arg14[%c0_43, %c0_44] : memref<1x32xf32, #tpu.memory_space<vmem>>, vector<1x32xf32>
    %102 = vector.broadcast %101 : vector<1x32xf32> to vector<8x32xf32>
    %103 = arith.addf %100, %102 : vector<8x32xf32>
    %104 = arith.mulf %90, %103 : vector<8x32xf32>
    %105 = arith.addf %99, %104 : vector<8x32xf32>
    %106 = math.tanh %105 : vector<8x32xf32>
    %cst_45 = arith.constant 1.000000e+00 : f32
    %107 = vector.broadcast %cst_45 : f32 to vector<8x32xf32>
    %108 = arith.subf %107, %98 : vector<8x32xf32>
    %109 = arith.mulf %108, %106 : vector<8x32xf32>
    %110 = arith.mulf %98, %6 : vector<8x32xf32>
    %111 = arith.addf %109, %110 : vector<8x32xf32>
    %c0_46 = arith.constant 0 : index
    %c0_47 = arith.constant 0 : index
    %c0_48 = arith.constant 0 : index
    %112 = vector.load %arg16[%c0_46, %c0_47, %c0_48] : memref<2x8x32xf32, #tpu.memory_space<vmem>>, vector<1x8x32xf32>
    %113 = vector.shape_cast %112 : vector<1x8x32xf32> to vector<8x32xf32>
    %114 = vector.shape_cast %73 : vector<8x32xf32> to vector<1x8x32xf32>
    tpu.vector_store %arg16[%c0_46, %c0_47, %c0_48], %114 {strides = array<i32>} : memref<2x8x32xf32, #tpu.memory_space<vmem>>, vector<1x8x32xf32>,
    %c1_49 = arith.constant 1 : index
    %c0_50 = arith.constant 0 : index
    %c0_51 = arith.constant 0 : index
    %115 = vector.load %arg16[%c1_49, %c0_50, %c0_51] : memref<2x8x32xf32, #tpu.memory_space<vmem>>, vector<1x8x32xf32>
    %116 = vector.shape_cast %115 : vector<1x8x32xf32> to vector<8x32xf32>
    %117 = vector.shape_cast %111 : vector<8x32xf32> to vector<1x8x32xf32>
    tpu.vector_store %arg16[%c1_49, %c0_50, %c0_51], %117 {strides = array<i32>} : memref<2x8x32xf32, #tpu.memory_space<vmem>>, vector<1x8x32xf32>,
    return
  }
  func.func @transform_0(%arg0: i32, %arg1: i32) -> (i32, i32) {
    %c0_i32 = arith.constant 0 : i32
    %c0_i32_0 = arith.constant 0 : i32
    return %arg0, %c0_i32 : i32, i32
  }
  func.func @transform_1(%arg0: i32, %arg1: i32) -> (i32, i32) {
    %c0_i32 = arith.constant 0 : i32
    %c0_i32_0 = arith.constant 0 : i32
    %c0_i32_1 = arith.constant 0 : i32
    return %c0_i32, %c0_i32_0 : i32, i32
  }
  func.func @transform_2(%arg0: i32, %arg1: i32) -> (i32, i32) {
    %c0_i32 = arith.constant 0 : i32
    %c0_i32_0 = arith.constant 0 : i32
    %c0_i32_1 = arith.constant 0 : i32
    return %c0_i32, %c0_i32_0 : i32, i32
  }
  func.func @transform_3(%arg0: i32, %arg1: i32) -> (i32, i32) {
    %c0_i32 = arith.constant 0 : i32
    %c0_i32_0 = arith.constant 0 : i32
    %c0_i32_1 = arith.constant 0 : i32
    return %c0_i32, %c0_i32_0 : i32, i32
  }
  func.func @transform_4(%arg0: i32, %arg1: i32) -> (i32, i32, i32) {
    %c0_i32 = arith.constant 0 : i32
    %c0_i32_0 = arith.constant 0 : i32
    return %arg1, %arg0, %c0_i32 : i32, i32, i32
  }
  func.func @transform_5(%arg0: i32, %arg1: i32) -> (i32, i32) {
    %c0_i32 = arith.constant 0 : i32
    %c0_i32_0 = arith.constant 0 : i32
    %c0_i32_1 = arith.constant 0 : i32
    return %c0_i32, %c0_i32_0 : i32, i32
  }
  func.func @transform_6(%arg0: i32, %arg1: i32) -> (i32, i32) {
    %c0_i32 = arith.constant 0 : i32
    %c0_i32_0 = arith.constant 0 : i32
    %c0_i32_1 = arith.constant 0 : i32
    return %c0_i32, %c0_i32_0 : i32, i32
  }
  func.func @transform_7(%arg0: i32, %arg1: i32) -> (i32, i32) {
    %c0_i32 = arith.constant 0 : i32
    %c0_i32_0 = arith.constant 0 : i32
    %c0_i32_1 = arith.constant 0 : i32
    return %c0_i32, %c0_i32_0 : i32, i32
  }
  func.func @transform_8(%arg0: i32, %arg1: i32) -> (i32, i32) {
    %c0_i32 = arith.constant 0 : i32
    %c0_i32_0 = arith.constant 0 : i32
    %c0_i32_1 = arith.constant 0 : i32
    return %c0_i32, %c0_i32_0 : i32, i32
  }
  func.func @transform_9(%arg0: i32, %arg1: i32) -> (i32, i32) {
    %c0_i32 = arith.constant 0 : i32
    %c0_i32_0 = arith.constant 0 : i32
    %c0_i32_1 = arith.constant 0 : i32
    return %c0_i32, %c0_i32_0 : i32, i32
  }
  func.func @transform_10(%arg0: i32, %arg1: i32) -> (i32, i32) {
    %c0_i32 = arith.constant 0 : i32
    %c0_i32_0 = arith.constant 0 : i32
    %c0_i32_1 = arith.constant 0 : i32
    return %c0_i32, %c0_i32_0 : i32, i32
  }
  func.func @transform_11(%arg0: i32, %arg1: i32) -> (i32, i32) {
    %c0_i32 = arith.constant 0 : i32
    %c0_i32_0 = arith.constant 0 : i32
    %c0_i32_1 = arith.constant 0 : i32
    return %c0_i32, %c0_i32_0 : i32, i32
  }
  func.func @transform_12(%arg0: i32, %arg1: i32) -> (i32, i32) {
    %c0_i32 = arith.constant 0 : i32
    %c0_i32_0 = arith.constant 0 : i32
    %c0_i32_1 = arith.constant 0 : i32
    return %c0_i32, %c0_i32_0 : i32, i32
  }
  func.func @transform_13(%arg0: i32, %arg1: i32) -> (i32, i32, i32) {
    %c0_i32 = arith.constant 0 : i32
    %c0_i32_0 = arith.constant 0 : i32
    return %arg1, %arg0, %c0_i32 : i32, i32, i32
  }
}

</mosaic_0001>

<llo_original>
// kernel: tpu_custom_call.1
$region0: #{tpu_custom_call.1}
  #allocation0 [shape = 'u32[]', space=smem, size = 0x4, offset = 0x4, fixed_abs, tag = 'smem constant byte address 0x4 - core index']
  #allocation1 [shape = 'u32[72,128]{1,0:T(1,128)}', space=vmem, size = 0x9000, scoped, tag = 'internal scratch']
  #allocation2 [shape = 'f32[2,8,32]{2,1,0:T(8,128)}', space=vmem, size = 0x2000, scoped, tag = 'scratch operand']
  %s0 = inlined_call_operand.hbm [shape: f32[8,32], index: 0, kind: input, shape index: {}]
  %s1 = inlined_call_operand.vmem [shape: bf16[128,32], index: 1, kind: input, shape index: {}]
  %s2 = inlined_call_operand.vmem [shape: bf16[32,128], index: 2, kind: input, shape index: {}]
  %s3 = inlined_call_operand.vmem [shape: f32[1,128], index: 3, kind: input, shape index: {}]
  %s4 = inlined_call_operand.vmem [shape: f32[6,8,128], index: 4, kind: input, shape index: {}]
  %s5 = inlined_call_operand.vmem [shape: bf16[32,96], index: 5, kind: input, shape index: {}]
  %s6 = inlined_call_operand.hbm [shape: bf16[32,96], index: 6, kind: input, shape index: {}]
  %s7 = inlined_call_operand.vmem [shape: f32[1,96], index: 7, kind: input, shape index: {}]
  %s8 = inlined_call_operand.vmem [shape: f32[1,32], index: 8, kind: input, shape index: {}]
  %s9 = inlined_call_operand.hbm [shape: bf16[32,96], index: 9, kind: input, shape index: {}]
  %s10 = inlined_call_operand.hbm [shape: bf16[32,96], index: 10, kind: input, shape index: {}]
  %s11 = inlined_call_operand.vmem [shape: f32[1,96], index: 11, kind: input, shape index: {}]
  %s12 = inlined_call_operand.vmem [shape: f32[1,32], index: 12, kind: input, shape index: {}]
  %s13 = inlined_call_operand.hbm [shape: bf16[6,8,128], index: 13, kind: output, shape index: {}]
  %s14 = sld [smem:[#allocation0]]
  $region105: #{tpu_custom_call.1} parent=0
    _
  %s16 = ssub.s32 1, %s14
  %s17 = scalar_select 0, %s16, %s14
  $region1: #{tpu_custom_call.1} parent=0
    #allocation3 [shape = 'u8[4096]{0}', space=vmem, size = 0x1000, scoped, tag = 'input window, operand 0, single buffered']
    #allocation4 [shape = 's32[2]{0}', space=sflag, size = 0x8, scoped, tag = 'scoped memory for tpu_custom_call.1']
    #allocation5 [shape = 's32[2]{0}', space=sflag, size = 0x8, scoped, tag = 'scoped memory for tpu_custom_call.1']
    #allocation6 [shape = 'u8[8192]{0}', space=vmem, size = 0x2000, scoped, tag = 'input window, operand 6, single buffered']
    #allocation7 [shape = 's32[1]{0}', space=sflag, size = 0x4, scoped, tag = 'scoped memory for tpu_custom_call.1']
    #allocation8 [shape = 'u8[8192]{0}', space=vmem, size = 0x2000, scoped, tag = 'input window, operand 9, single buffered']
    #allocation9 [shape = 'u8[8192]{0}', space=vmem, size = 0x2000, scoped, tag = 'input window, operand 10, single buffered']
    #allocation10 [shape = 's32[1]{0}', space=sflag, size = 0x4, scoped, tag = 'scoped memory for tpu_custom_call.1']
    #allocation11 [shape = 'u8[4096]{0}', space=vmem, size = 0x1000, scoped, tag = 'output window, operand 0']
    %18 = vsyncpa [#allocation4], 0
    %19 = vsyncpa [#allocation7], 0
    %20 = vsyncpa [#allocation10], 0
    %21 = vsyncpa [#allocation5], 0
    %s22 = scalar_lea.sflag [#allocation5], 1
    %23 = vsyncpa %s22, 0
    loop: start=0, step=1, limit=8
    $region2: #{tpu_custom_call.1} parent=1 // loop_pre_header
      _
    $region3: #{tpu_custom_call.1} parent=1 // loop_header
      %s25 = sphi 0, %s29
      %p26 = scmp.ge.s32.totalorder %s25, 8
      %s32 = sphi 0, %s44
      %s33 = sphi 0, %s40
      %s34 = sphi 0, %s32
      %s35 = sphi 0, %s33
      %s36 = sphi 0, %s34
      %s37 = sphi 0, %s35
      %s47 = sphi 0, %s49
      %s50 = sphi 0, %s47
      %s51 = sphi 0, %s50
      %s67 = sphi 0, %s51
      %s71 = sphi 0, %s71
      %s73 = sphi 0, %s71
      %s74 = sphi 0, %s73
      %s88 = sphi 0, %s74
      %s92 = sphi 0, %s92
      %s94 = sphi 0, %s92
      %s95 = sphi 0, %s94
      %s109 = sphi 0, %s95
      %s113 = sphi 0, %s113
      %s115 = sphi 0, %s113
      %s116 = sphi 0, %s115
      %s130 = sphi 0, %s116
      %s138 = sphi 0, %s140
      %s141 = sphi 0, %s138
      %s142 = sphi 0, %s141
      %s158 = sphi 0, %s142
      %s162 = sphi 0, %s162
      %s164 = sphi 0, %s162
      %s165 = sphi 0, %s164
      %s179 = sphi 0, %s165
      %s183 = sphi 0, %s183
      %s185 = sphi 0, %s183
      %s186 = sphi 0, %s185
      %s200 = sphi 0, %s186
      %s204 = sphi 0, %s204
      %s206 = sphi 0, %s204
      %s207 = sphi 0, %s206
      %s221 = sphi 0, %s207
      %s225 = sphi 0, %s225
      %s227 = sphi 0, %s225
      %s228 = sphi 0, %s227
      %s242 = sphi 0, %s228
      %s246 = sphi 0, %s246
      %s248 = sphi 0, %s246
      %s249 = sphi 0, %s248
      %s263 = sphi 0, %s249
      %s267 = sphi 0, %s267
      %s269 = sphi 0, %s267
      %s270 = sphi 0, %s269
      %s284 = sphi 0, %s270
      %s288 = sphi 0, %s288
      %s290 = sphi 0, %s288
      %s291 = sphi 0, %s290
      %s305 = sphi 0, %s291
      %s309 = sphi 0, %s309
      %s311 = sphi 0, %s309
      %s312 = sphi 0, %s311
      %s326 = sphi 0, %s312
      %s334 = sphi 0, %s336
      %s337 = sphi 0, %s334
      %s338 = sphi 0, %s337
      %s354 = sphi 0, %s338
    $region4: #{tpu_custom_call.1} parent=1 // loop_header_branch
      %28 = sbr.rel (%p26) target = $region8
    $region5: #{tpu_custom_call.1} parent=1 // loop_body
      %s30 = ssub.s32 %s25, 1
      %s31 = ssub.s32 %s25, 2
      %s38 = sadd.s32 1, %s33
      %p39 = scmp.ge.s32.totalorder %s38, 6
      %s40 = scalar_select %p39, 0, %s38
      %s41 = sadd.s32 1, %s32
      %s42 = scalar_select %p39, %s41, %s32
      %p43 = scmp.ge.s32.totalorder %s42, 1
      %s44 = scalar_select %p43, 0, %s42
      %s45 = ssub.s32 %s32, %s44
      %p46 = scmp.eq.s32.totalorder %s45, 0
      %s48 = sadd.s32 %s47, 1
      %s49 = scalar_select %p46, %s47, %s48
      %p52 = pneg %p46
      %p53 = scmp.eq.s32.totalorder %s25, 5
      %p54 = por %p52, %p53
      %p55 = scmp.ne.s32.totalorder %s47, %s50
      %p56 = scmp.eq.s32.totalorder %s25, 0
      %p57 = por %p55, %p56
      %p58 = scmp.ne.s32.totalorder %s47, %s50
      %p59 = scmp.eq.s32.totalorder %s30, 5
      %p60 = por %p58, %p59
      %p61 = scmp.ne.s32.totalorder %s50, %s51
      %p62 = scmp.eq.s32.totalorder %s30, 0
      %p63 = por %p61, %p62
      %p64 = scmp.ne.s32.totalorder %s50, %s51
      %p65 = scmp.eq.s32.totalorder %s31, 5
      %p66 = por %p64, %p65
      %p68 = scmp.ne.s32.totalorder %s51, %s67
      %p69 = scmp.eq.s32.totalorder %s31, 0
      %p70 = por %p68, %p69
      %s72 = sadd.s32 %s71, 1
      %p75 = scmp.eq.s32.totalorder %s25, 5
      %p76 = scmp.ne.s32.totalorder %s71, %s73
      %p77 = scmp.eq.s32.totalorder %s25, 0
      %p78 = por %p76, %p77
      %p79 = scmp.ne.s32.totalorder %s71, %s73
      %p80 = scmp.eq.s32.totalorder %s30, 5
      %p81 = por %p79, %p80
      %p82 = scmp.ne.s32.totalorder %s73, %s74
      %p83 = scmp.eq.s32.totalorder %s30, 0
      %p84 = por %p82, %p83
      %p85 = scmp.ne.s32.totalorder %s73, %s74
      %p86 = scmp.eq.s32.totalorder %s31, 5
      %p87 = por %p85, %p86
      %p89 = scmp.ne.s32.totalorder %s74, %s88
      %p90 = scmp.eq.s32.totalorder %s31, 0
      %p91 = por %p89, %p90
      %s93 = sadd.s32 %s92, 1
      %p96 = scmp.eq.s32.totalorder %s25, 5
      %p97 = scmp.ne.s32.totalorder %s92, %s94
      %p98 = scmp.eq.s32.totalorder %s25, 0
      %p99 = por %p97, %p98
      %p100 = scmp.ne.s32.totalorder %s92, %s94
      %p101 = scmp.eq.s32.totalorder %s30, 5
      %p102 = por %p100, %p101
      %p103 = scmp.ne.s32.totalorder %s94, %s95
      %p104 = scmp.eq.s32.totalorder %s30, 0
      %p105 = por %p103, %p104
      %p106 = scmp.ne.s32.totalorder %s94, %s95
      %p107 = scmp.eq.s32.totalorder %s31, 5
      %p108 = por %p106, %p107
      %p110 = scmp.ne.s32.totalorder %s95, %s109
      %p111 = scmp.eq.s32.totalorder %s31, 0
      %p112 = por %p110, %p111
      %s114 = sadd.s32 %s113, 1
      %p117 = scmp.eq.s32.totalorder %s25, 5
      %p118 = scmp.ne.s32.totalorder %s113, %s115
      %p119 = scmp.eq.s32.totalorder %s25, 0
      %p120 = por %p118, %p119
      %p121 = scmp.ne.s32.totalorder %s113, %s115
      %p122 = scmp.eq.s32.totalorder %s30, 5
      %p123 = por %p121, %p122
      %p124 = scmp.ne.s32.totalorder %s115, %s116
      %p125 = scmp.eq.s32.totalorder %s30, 0
      %p126 = por %p124, %p125
      %p127 = scmp.ne.s32.totalorder %s115, %s116
      %p128 = scmp.eq.s32.totalorder %s31, 5
      %p129 = por %p127, %p128
      %p131 = scmp.ne.s32.totalorder %s116, %s130
      %p132 = scmp.eq.s32.totalorder %s31, 0
      %p133 = por %p131, %p132
      %s134 = ssub.s32 %s33, %s40
      %s135 = ssub.s32 %s32, %s44
      %s136 = sor.u32 %s134, %s135
      %p137 = scmp.eq.s32.totalorder %s136, 0
      %s139 = sadd.s32 %s138, 1
      %s140 = scalar_select %p137, %s138, %s139
      %p143 = pneg %p137
      %p144 = scmp.eq.s32.totalorder %s25, 5
      %p145 = por %p143, %p144
      %p146 = scmp.ne.s32.totalorder %s138, %s141
      %p147 = scmp.eq.s32.totalorder %s25, 0
      %p148 = por %p146, %p147
      %p149 = scmp.ne.s32.totalorder %s138, %s141
      %p150 = scmp.eq.s32.totalorder %s30, 5
      %p151 = por %p149, %p150
      %p152 = scmp.ne.s32.totalorder %s141, %s142
      %p153 = scmp.eq.s32.totalorder %s30, 0
      %p154 = por %p152, %p153
      %p155 = scmp.ne.s32.totalorder %s141, %s142
      %p156 = scmp.eq.s32.totalorder %s31, 5
      %p157 = por %p155, %p156
      %p159 = scmp.ne.s32.totalorder %s142, %s158
      %p160 = scmp.eq.s32.totalorder %s31, 0
      %p161 = por %p159, %p160
      %s163 = sadd.s32 %s162, 1
      %p166 = scmp.eq.s32.totalorder %s25, 5
      %p167 = scmp.ne.s32.totalorder %s162, %s164
      %p168 = scmp.eq.s32.totalorder %s25, 0
      %p169 = por %p167, %p168
      %p170 = scmp.ne.s32.totalorder %s162, %s164
      %p171 = scmp.eq.s32.totalorder %s30, 5
      %p172 = por %p170, %p171
      %p173 = scmp.ne.s32.totalorder %s164, %s165
      %p174 = scmp.eq.s32.totalorder %s30, 0
      %p175 = por %p173, %p174
      %p176 = scmp.ne.s32.totalorder %s164, %s165
      %p177 = scmp.eq.s32.totalorder %s31, 5
      %p178 = por %p176, %p177
      %p180 = scmp.ne.s32.totalorder %s165, %s179
      %p181 = scmp.eq.s32.totalorder %s31, 0
      %p182 = por %p180, %p181
      %s184 = sadd.s32 %s183, 1
      %p187 = scmp.eq.s32.totalorder %s25, 5
      %p188 = scmp.ne.s32.totalorder %s183, %s185
      %p189 = scmp.eq.s32.totalorder %s25, 0
      %p190 = por %p188, %p189
      %p191 = scmp.ne.s32.totalorder %s183, %s185
      %p192 = scmp.eq.s32.totalorder %s30, 5
      %p193 = por %p191, %p192
      %p194 = scmp.ne.s32.totalorder %s185, %s186
      %p195 = scmp.eq.s32.totalorder %s30, 0
      %p196 = por %p194, %p195
      %p197 = scmp.ne.s32.totalorder %s185, %s186
      %p198 = scmp.eq.s32.totalorder %s31, 5
      %p199 = por %p197, %p198
      %p201 = scmp.ne.s32.totalorder %s186, %s200
      %p202 = scmp.eq.s32.totalorder %s31, 0
      %p203 = por %p201, %p202
      %s205 = sadd.s32 %s204, 1
      %p208 = scmp.eq.s32.totalorder %s25, 5
      %p209 = scmp.ne.s32.totalorder %s204, %s206
      %p210 = scmp.eq.s32.totalorder %s25, 0
      %p211 = por %p209, %p210
      %p212 = scmp.ne.s32.totalorder %s204, %s206
      %p213 = scmp.eq.s32.totalorder %s30, 5
      %p214 = por %p212, %p213
      %p215 = scmp.ne.s32.totalorder %s206, %s207
      %p216 = scmp.eq.s32.totalorder %s30, 0
      %p217 = por %p215, %p216
      %p218 = scmp.ne.s32.totalorder %s206, %s207
      %p219 = scmp.eq.s32.totalorder %s31, 5
      %p220 = por %p218, %p219
      %p222 = scmp.ne.s32.totalorder %s207, %s221
      %p223 = scmp.eq.s32.totalorder %s31, 0
      %p224 = por %p222, %p223
      %s226 = sadd.s32 %s225, 1
      %p229 = scmp.eq.s32.totalorder %s25, 5
      %p230 = scmp.ne.s32.totalorder %s225, %s227
      %p231 = scmp.eq.s32.totalorder %s25, 0
      %p232 = por %p230, %p231
      %p233 = scmp.ne.s32.totalorder %s225, %s227
      %p234 = scmp.eq.s32.totalorder %s30, 5
      %p235 = por %p233, %p234
      %p236 = scmp.ne.s32.totalorder %s227, %s228
      %p237 = scmp.eq.s32.totalorder %s30, 0
      %p238 = por %p236, %p237
      %p239 = scmp.ne.s32.totalorder %s227, %s228
      %p240 = scmp.eq.s32.totalorder %s31, 5
      %p241 = por %p239, %p240
      %p243 = scmp.ne.s32.totalorder %s228, %s242
      %p244 = scmp.eq.s32.totalorder %s31, 0
      %p245 = por %p243, %p244
      %s247 = sadd.s32 %s246, 1
      %p250 = scmp.eq.s32.totalorder %s25, 5
      %p251 = scmp.ne.s32.totalorder %s246, %s248
      %p252 = scmp.eq.s32.totalorder %s25, 0
      %p253 = por %p251, %p252
      %p254 = scmp.ne.s32.totalorder %s246, %s248
      %p255 = scmp.eq.s32.totalorder %s30, 5
      %p256 = por %p254, %p255
      %p257 = scmp.ne.s32.totalorder %s248, %s249
      %p258 = scmp.eq.s32.totalorder %s30, 0
      %p259 = por %p257, %p258
      %p260 = scmp.ne.s32.totalorder %s248, %s249
      %p261 = scmp.eq.s32.totalorder %s31, 5
      %p262 = por %p260, %p261
      %p264 = scmp.ne.s32.totalorder %s249, %s263
      %p265 = scmp.eq.s32.totalorder %s31, 0
      %p266 = por %p264, %p265
      %s268 = sadd.s32 %s267, 1
      %p271 = scmp.eq.s32.totalorder %s25, 5
      %p272 = scmp.ne.s32.totalorder %s267, %s269
      %p273 = scmp.eq.s32.totalorder %s25, 0
      %p274 = por %p272, %p273
      %p275 = scmp.ne.s32.totalorder %s267, %s269
      %p276 = scmp.eq.s32.totalorder %s30, 5
      %p277 = por %p275, %p276
      %p278 = scmp.ne.s32.totalorder %s269, %s270
      %p279 = scmp.eq.s32.totalorder %s30, 0
      %p280 = por %p278, %p279
      %p281 = scmp.ne.s32.totalorder %s269, %s270
      %p282 = scmp.eq.s32.totalorder %s31, 5
      %p283 = por %p281, %p282
      %p285 = scmp.ne.s32.totalorder %s270, %s284
      %p286 = scmp.eq.s32.totalorder %s31, 0
      %p287 = por %p285, %p286
      %s289 = sadd.s32 %s288, 1
      %p292 = scmp.eq.s32.totalorder %s25, 5
      %p293 = scmp.ne.s32.totalorder %s288, %s290
      %p294 = scmp.eq.s32.totalorder %s25, 0
      %p295 = por %p293, %p294
      %p296 = scmp.ne.s32.totalorder %s288, %s290
      %p297 = scmp.eq.s32.totalorder %s30, 5
      %p298 = por %p296, %p297
      %p299 = scmp.ne.s32.totalorder %s290, %s291
      %p300 = scmp.eq.s32.totalorder %s30, 0
      %p301 = por %p299, %p300
      %p302 = scmp.ne.s32.totalorder %s290, %s291
      %p303 = scmp.eq.s32.totalorder %s31, 5
      %p304 = por %p302, %p303
      %p306 = scmp.ne.s32.totalorder %s291, %s305
      %p307 = scmp.eq.s32.totalorder %s31, 0
      %p308 = por %p306, %p307
      %s310 = sadd.s32 %s309, 1
      %p313 = scmp.eq.s32.totalorder %s25, 5
      %p314 = scmp.ne.s32.totalorder %s309, %s311
      %p315 = scmp.eq.s32.totalorder %s25, 0
      %p316 = por %p314, %p315
      %p317 = scmp.ne.s32.totalorder %s309, %s311
      %p318 = scmp.eq.s32.totalorder %s30, 5
      %p319 = por %p317, %p318
      %p320 = scmp.ne.s32.totalorder %s311, %s312
      %p321 = scmp.eq.s32.totalorder %s30, 0
      %p322 = por %p320, %p321
      %p323 = scmp.ne.s32.totalorder %s311, %s312
      %p324 = scmp.eq.s32.totalorder %s31, 5
      %p325 = por %p323, %p324
      %p327 = scmp.ne.s32.totalorder %s312, %s326
      %p328 = scmp.eq.s32.totalorder %s31, 0
      %p329 = por %p327, %p328
      %s330 = ssub.s32 %s33, %s40
      %s331 = ssub.s32 %s32, %s44
      %s332 = sor.u32 %s330, %s331
      %p333 = scmp.eq.s32.totalorder %s332, 0
      %s335 = sadd.s32 %s334, 1
      %s336 = scalar_select %p333, %s334, %s335
      %p339 = pneg %p333
      %p340 = scmp.eq.s32.totalorder %s25, 5
      %p341 = por %p339, %p340
      %p342 = scmp.ne.s32.totalorder %s334, %s337
      %p343 = scmp.eq.s32.totalorder %s25, 0
      %p344 = por %p342, %p343
      %p345 = scmp.ne.s32.totalorder %s334, %s337
      %p346 = scmp.eq.s32.totalorder %s30, 5
      %p347 = por %p345, %p346
      %p348 = scmp.ne.s32.totalorder %s337, %s338
      %p349 = scmp.eq.s32.totalorder %s30, 0
      %p350 = por %p348, %p349
      %p351 = scmp.ne.s32.totalorder %s337, %s338
      %p352 = scmp.eq.s32.totalorder %s31, 5
      %p353 = por %p351, %p352
      %p355 = scmp.ne.s32.totalorder %s338, %s354
      %p356 = scmp.eq.s32.totalorder %s31, 0
      %p357 = por %p355, %p356
      %p358 = scmp.le.s32.totalorder 1, %s25
      %p359 = scmp.lt.s32.totalorder %s25, 7
      %p360 = pnand %p358, %p359
      %p361 = pneg %p360
      // Predicated region
      $region9: #{tpu_custom_call.1} parent=5 // pred_check
        _
      $region10: #{tpu_custom_call.1} parent=5 // pred_check_branch
        %363 = sbr.rel (%p360) target = $region12
      $region11: #{tpu_custom_call.1} parent=5 // pred_region
        %s364 = ssub.s32 %s25, 1
        // Predicated region
        $region13: #{tpu_custom_call.1} parent=11 // pred_check
          %p365 = pneg %p63
        $region14: #{tpu_custom_call.1} parent=11 // pred_check_branch
          %367 = sbr.rel (%p365) target = $region16
        $region15: #{tpu_custom_call.1} parent=11 // pred_region
          %369 = vsyncadd [#allocation4], 0
          %s370 = smul.addr %s34, 8
          %s371 = scalar_lea.hbm %s0, %s370
          %s373 = sshll.u32 %s371, 4
          %s374 = int_to_ptr.hbm [resolvable:$true] %s373
          %s375 = sshll.u32 [#allocation3], 4
          %s376 = int_to_ptr.vmem [resolvable:$true] %s375
          %378 = dma.hbm_to_vmem [thread:$0]  %s374, 128, %s376, [#allocation4]
        $region16: #{tpu_custom_call.1} parent=11 // pred_fallthru
          _
        // Predicated region
        $region17: #{tpu_custom_call.1} parent=11 // pred_check
          %p379 = pneg %p84
        $region18: #{tpu_custom_call.1} parent=11 // pred_check_branch
          %381 = sbr.rel (%p379) target = $region20
        $region19: #{tpu_custom_call.1} parent=11 // pred_region
          _
        $region20: #{tpu_custom_call.1} parent=11 // pred_fallthru
          _
        // Predicated region
        $region21: #{tpu_custom_call.1} parent=11 // pred_check
          %p382 = pneg %p105
        $region22: #{tpu_custom_call.1} parent=11 // pred_check_branch
          %384 = sbr.rel (%p382) target = $region24
        $region23: #{tpu_custom_call.1} parent=11 // pred_region
          _
        $region24: #{tpu_custom_call.1} parent=11 // pred_fallthru
          _
        // Predicated region
        $region25: #{tpu_custom_call.1} parent=11 // pred_check
          %p385 = pneg %p126
        $region26: #{tpu_custom_call.1} parent=11 // pred_check_branch
          %387 = sbr.rel (%p385) target = $region28
        $region27: #{tpu_custom_call.1} parent=11 // pred_region
          _
        $region28: #{tpu_custom_call.1} parent=11 // pred_fallthru
          _
        // Predicated region
        $region29: #{tpu_custom_call.1} parent=11 // pred_check
          %p388 = pneg %p175
        $region30: #{tpu_custom_call.1} parent=11 // pred_check_branch
          %390 = sbr.rel (%p388) target = $region32
        $region31: #{tpu_custom_call.1} parent=11 // pred_region
          _
        $region32: #{tpu_custom_call.1} parent=11 // pred_fallthru
          _
        // Predicated region
        $region33: #{tpu_custom_call.1} parent=11 // pred_check
          %p391 = pneg %p196
        $region34: #{tpu_custom_call.1} parent=11 // pred_check_branch
          %393 = sbr.rel (%p391) target = $region36
        $region35: #{tpu_custom_call.1} parent=11 // pred_region
          %395 = vsyncadd [#allocation7], 0
          %s396 = sshll.u32 %s6, 4
          %s397 = int_to_ptr.hbm [resolvable:$true] %s396
          %s398 = sshll.u32 [#allocation6], 4
          %s399 = int_to_ptr.vmem [resolvable:$true] %s398
          %404 = dma.hbm_to_vmem [thread:$0]  %s397, 256, %s399, [#allocation7], 64, 64, 4
        $region36: #{tpu_custom_call.1} parent=11 // pred_fallthru
          _
        // Predicated region
        $region37: #{tpu_custom_call.1} parent=11 // pred_check
          %p405 = pneg %p217
        $region38: #{tpu_custom_call.1} parent=11 // pred_check_branch
          %407 = sbr.rel (%p405) target = $region40
        $region39: #{tpu_custom_call.1} parent=11 // pred_region
          _
        $region40: #{tpu_custom_call.1} parent=11 // pred_fallthru
          _
        // Predicated region
        $region41: #{tpu_custom_call.1} parent=11 // pred_check
          %p408 = pneg %p238
        $region42: #{tpu_custom_call.1} parent=11 // pred_check_branch
          %410 = sbr.rel (%p408) target = $region44
        $region43: #{tpu_custom_call.1} parent=11 // pred_region
          _
        $region44: #{tpu_custom_call.1} parent=11 // pred_fallthru
          _
        // Predicated region
        $region45: #{tpu_custom_call.1} parent=11 // pred_check
          %p411 = pneg %p259
        $region46: #{tpu_custom_call.1} parent=11 // pred_check_branch
          %413 = sbr.rel (%p411) target = $region48
        $region47: #{tpu_custom_call.1} parent=11 // pred_region
          %415 = vsyncadd [#allocation7], 0
          %s416 = sshll.u32 %s9, 4
          %s417 = int_to_ptr.hbm [resolvable:$true] %s416
          %s418 = sshll.u32 [#allocation8], 4
          %s419 = int_to_ptr.vmem [resolvable:$true] %s418
          %424 = dma.hbm_to_vmem [thread:$0]  %s417, 256, %s419, [#allocation7], 64, 64, 4
        $region48: #{tpu_custom_call.1} parent=11 // pred_fallthru
          _
        // Predicated region
        $region49: #{tpu_custom_call.1} parent=11 // pred_check
          %p425 = pneg %p280
        $region50: #{tpu_custom_call.1} parent=11 // pred_check_branch
          %427 = sbr.rel (%p425) target = $region52
        $region51: #{tpu_custom_call.1} parent=11 // pred_region
          %429 = vsyncadd [#allocation10], 0
          %s430 = sshll.u32 %s10, 4
          %s431 = int_to_ptr.hbm [resolvable:$true] %s430
          %s432 = sshll.u32 [#allocation9], 4
          %s433 = int_to_ptr.vmem [resolvable:$true] %s432
          %438 = dma.hbm_to_vmem [thread:$0]  %s431, 256, %s433, [#allocation10], 64, 64, 4
        $region52: #{tpu_custom_call.1} parent=11 // pred_fallthru
          _
        // Predicated region
        $region53: #{tpu_custom_call.1} parent=11 // pred_check
          %p439 = pneg %p301
        $region54: #{tpu_custom_call.1} parent=11 // pred_check_branch
          %441 = sbr.rel (%p439) target = $region56
        $region55: #{tpu_custom_call.1} parent=11 // pred_region
          _
        $region56: #{tpu_custom_call.1} parent=11 // pred_fallthru
          _
        // Predicated region
        $region57: #{tpu_custom_call.1} parent=11 // pred_check
          %p442 = pneg %p322
        $region58: #{tpu_custom_call.1} parent=11 // pred_check_branch
          %444 = sbr.rel (%p442) target = $region60
        $region59: #{tpu_custom_call.1} parent=11 // pred_region
          _
        $region60: #{tpu_custom_call.1} parent=11 // pred_fallthru
          _
      $region12: #{tpu_custom_call.1} parent=5 // pred_fallthru
        _
      %p445 = scmp.lt.s32.totalorder %s25, 6
      // Predicated region
      $region61: #{tpu_custom_call.1} parent=5 // pred_check
        %p446 = pneg %p445
      $region62: #{tpu_custom_call.1} parent=5 // pred_check_branch
        %448 = sbr.rel (%p446) target = $region64
      $region63: #{tpu_custom_call.1} parent=5 // pred_region
        // Predicated region
        $region65: #{tpu_custom_call.1} parent=63 // pred_check
          %p449 = pneg %p148
        $region66: #{tpu_custom_call.1} parent=63 // pred_check_branch
          %451 = sbr.rel (%p449) target = $region68
        $region67: #{tpu_custom_call.1} parent=63 // pred_region
          %p452 = scmp.lt.s32.totalorder %s33, 5
          %s453 = scalar_select %p452, %s33, 5
          %p454 = scmp.lt.s32.totalorder %s32, 0
          %s455 = scalar_select %p454, %s32, 0
          %s456 = sadd.s32 %s455, %s453
          %s457 = smul.addr %s456, 8
          %s458 = scalar_lea.vmem %s4, %s457
        $region68: #{tpu_custom_call.1} parent=63 // pred_fallthru
          _
      $region64: #{tpu_custom_call.1} parent=5 // pred_fallthru
        _
      %p459 = scmp.le.s32.totalorder 1, %s25
      %p460 = scmp.lt.s32.totalorder %s25, 7
      %p461 = pnand %p459, %p460
      %p462 = pneg %p461
      // Predicated region
      $region69: #{tpu_custom_call.1} parent=5 // pred_check
        _
      $region70: #{tpu_custom_call.1} parent=5 // pred_check_branch
        %464 = sbr.rel (%p461) target = $region72
      $region71: #{tpu_custom_call.1} parent=5 // pred_region
        %s465 = ssub.s32 %s25, 1
        // Predicated region
        $region73: #{tpu_custom_call.1} parent=71 // pred_check
          %p466 = pneg %p63
        $region74: #{tpu_custom_call.1} parent=71 // pred_check_branch
          %468 = sbr.rel (%p466) target = $region76
        $region75: #{tpu_custom_call.1} parent=71 // pred_region
          %470 = dma.done [#allocation4], 128
        $region76: #{tpu_custom_call.1} parent=71 // pred_fallthru
          _
        // Predicated region
        $region77: #{tpu_custom_call.1} parent=71 // pred_check
          %p471 = pneg %p196
        $region78: #{tpu_custom_call.1} parent=71 // pred_check_branch
          %473 = sbr.rel (%p471) target = $region80
        $region79: #{tpu_custom_call.1} parent=71 // pred_region
          %475 = dma.done [#allocation7], 256
        $region80: #{tpu_custom_call.1} parent=71 // pred_fallthru
          _
        // Predicated region
        $region81: #{tpu_custom_call.1} parent=71 // pred_check
          %p476 = pneg %p259
        $region82: #{tpu_custom_call.1} parent=71 // pred_check_branch
          %478 = sbr.rel (%p476) target = $region84
        $region83: #{tpu_custom_call.1} parent=71 // pred_region
          %480 = dma.done [#allocation7], 256
        $region84: #{tpu_custom_call.1} parent=71 // pred_fallthru
          _
        // Predicated region
        $region85: #{tpu_custom_call.1} parent=71 // pred_check
          %p481 = pneg %p280
        $region86: #{tpu_custom_call.1} parent=71 // pred_check_branch
          %483 = sbr.rel (%p481) target = $region88
        $region87: #{tpu_custom_call.1} parent=71 // pred_region
          %485 = dma.done [#allocation10], 256
        $region88: #{tpu_custom_call.1} parent=71 // pred_fallthru
          _
        %p486 = pneg %p63
        %p487 = pneg %p60
        %p488 = pneg %p84
        %p489 = pneg %p81
        %p490 = pneg %p105
        %p491 = pneg %p102
        %p492 = pneg %p126
        %p493 = pneg %p123
        %p494 = scmp.lt.s32.totalorder %s35, 5
        %s495 = scalar_select %p494, %s35, 5
        %p496 = scmp.lt.s32.totalorder %s34, 0
        %s497 = scalar_select %p496, %s34, 0
        %s498 = sadd.s32 %s497, %s495
        %s499 = smul.addr %s498, 8
        %s500 = scalar_lea.vmem %s4, %s499
        %p501 = pneg %p154
        %p502 = pneg %p151
        %p503 = pneg %p175
        %p504 = pneg %p172
        %p505 = pneg %p196
        %p506 = pneg %p193
        %p507 = pneg %p217
        %p508 = pneg %p214
        %p509 = pneg %p238
        %p510 = pneg %p235
        %p511 = pneg %p259
        %p512 = pneg %p256
        %p513 = pneg %p280
        %p514 = pneg %p277
        %p515 = pneg %p301
        %p516 = pneg %p298
        %p517 = pneg %p322
        %p518 = pneg %p319
        %p519 = pneg %p350
        %p520 = pneg %p347
        %s521 = sand.u32 %s337, 1
        %s522 = scalar_lea.sflag [#allocation5], %s521
        %s523 = sand.u32 %s337, 1
        %s524 = smul.addr %s523, 4
        %s525 = scalar_lea.vmem [#allocation11], %s524
        %p526 = scmp.lt.s32.totalorder %s35, 5
        %s527 = scalar_select %p526, %s35, 5
        %p528 = scmp.lt.s32.totalorder %s34, 0
        %s529 = scalar_select %p528, %s34, 0
        %s530 = sadd.s32 %s529, %s527
        %s531 = smul.addr %s530, 8
        %s532 = scalar_lea.vmem %s4, %s531
        %p534 = scmp.eq.s32.totalorder %s35, 0
        // Predicated region
        $region89: #{tpu_custom_call.1} parent=71 // pred_check
          %p535 = pneg %p534
        $region90: #{tpu_custom_call.1} parent=71 // pred_check_branch
          %537 = sbr.rel (%p535) target = $region92
        $region91: #{tpu_custom_call.1} parent=71 // pred_region
          %v538 = vld [vmem:[#allocation3] sm:$0xff]
          %v539 = vld [vmem:[%s1] sm:$0x2]
          %v541 = vpack.i.b16 %v539, %v539
          %v543 = vperm.slane %v541, 1
          %v544 = vld [vmem:[%s5] sm:$0xf]
          %v545 = vld [vmem:[%s5 + $0x4] sm:$0xf]
          %v546 = vld [vmem:[%s5 + $0x8] sm:$0xf]
          %v547 = vld [vmem:[%s5 + $0xc] sm:$0xf]
          %v548 = vld [vmem:[%s7] sm:$0x1]
          %v550 = vperm.slane %v548, 0
          %v556 = vunpack.c.l.b16 %v544
          %v557 = vunpack.c.l.b16 %v545
          %v558 = vunpack.c.l.b16 %v546
          %v559 = vunpack.c.l.b16 %v547
          %v560 = vpack.c.b16 %v557, %v556
          %v561 = vpack.c.b16 %v559, %v558
          %vm564 = vcmask 261120
          %v566 = vsel %vm564, %v543, 0
          %568 = vmatpush.bf16.msra.mxu0 0
          %569 = vmatpush.bf16.msra.mxu0 0
          %570 = vmatpush.bf16.msra.mxu0 0
          %571 = vmatpush.bf16.msra.mxu0 0
          %572 = vmatpush.bf16.msra.mxu0 0
          %573 = vmatpush.bf16.msra.mxu0 0
          %574 = vmatpush.bf16.msra.mxu0 %v561
          %575 = vmatpush.bf16.msra.mxu0 %v560
          %576 = vmatmul.bf16.gmra.mxu0 %v566
          %v577 = vpop.f32.mrf.mxu0
          %v578 = vadd.f32 %v550, %v577
          %v579 = vpop.f32.mrf.mxu0
          %580 = vdwg.mxu0
          %v581 = vpack.c.bf16 %v538, %v538
          %v582 = vld [vmem:[#allocation6] sm:$0xf]
          %v583 = vld [vmem:[#allocation6 + $0x4] sm:$0xf]
          %v584 = vld [vmem:[#allocation6 + $0x8] sm:$0xf]
          %v585 = vld [vmem:[#allocation6 + $0xc] sm:$0xf]
          %v590 = vunpack.c.l.b16 %v582
          %v591 = vunpack.c.l.b16 %v583
          %v592 = vunpack.c.l.b16 %v584
          %v593 = vunpack.c.l.b16 %v585
          %v594 = vpack.c.b16 %v591, %v590
          %v595 = vpack.c.b16 %v593, %v592
          %v599 = vsel %vm564, %v581, 0
          %601 = vmatpush.bf16.msra.mxu0 0
          %602 = vmatpush.bf16.msra.mxu0 0
          %603 = vmatpush.bf16.msra.mxu0 0
          %604 = vmatpush.bf16.msra.mxu0 0
          %605 = vmatpush.bf16.msra.mxu0 0
          %606 = vmatpush.bf16.msra.mxu0 0
          %607 = vmatpush.bf16.msra.mxu0 %v595
          %608 = vmatpush.bf16.msra.mxu0 %v594
          %609 = vmatmul.bf16.gmra.mxu0 %v599
          %v610 = vpop.f32.mrf.mxu0
          %v611 = vadd.f32 0.0, %v610
          %v612 = vpop.f32.mrf.mxu0
          %613 = vdwg.mxu0
          %v614 = vadd.f32 %v578, %v611
          %v615 = vxor.u32 %v614, 2147483648
          %v616 = vmul.f32 %v615, 1.442695
          %v617 = vpow.pop %v616
          %v618 = vadd.f32 %v617, 1.0
          %v619 = vrcp.pop %v618
          %v620 = vmul.f32 %v618, %v619
          %v621 = vsub.f32 1.0, %v620
          %v622 = vmul.f32 %v619, %v621
          %v623 = vadd.f32 %v619, %v622
          %vm624 = vweird.f32 %v618
          %vm625 = vweird.f32 %v619
          %vm626 = vmor %vm624, %vm625
          %v627 = vsel %vm626, %v619, %v623
          %v628 = vand.u32 2147483647, %v618
          %vm629 = vcmp.eq.f32.partialorder %v628, 8.507059e+37
          %v630 = vand.u32 %v618, 2147483648
          %v631 = vor.u32 1.1754944e-38, %v630
          %v632 = vsel %vm629, %v631, %v627
          %v633 = vmul.f32 1.0, %v632
          %v634 = vld [vmem:[%s8] sm:$0x1]
          %v636 = vperm.slane %v634, 0
          %637 = vrot.lane.b32.xlu0 %v636, 64
          %v638 = vpop.permute.xlu0 %637
          %v640 = vadd.f32 %v611, %v638
          %642 = vrot.lane.b32.xlu0 %v640, 64
          %v643 = vpop.permute.xlu0 %642
          %v645 = vmul.f32 %v633, %v643
          %647 = vrot.lane.b32.xlu0 %v645, 64
          %v648 = vpop.permute.xlu0 %647
          %v650 = vadd.f32 %v578, %v648
          %v651 = vtanh.pop %v650
          %v652 = vsub.f32 1.0, %v633
          %654 = vrot.lane.b32.xlu0 %v651, 96
          %v655 = vpop.permute.xlu0 %654
          %v657 = vmul.f32 %v652, %v655
          %659 = vrot.lane.b32.xlu0 %v538, 32
          %v660 = vpop.permute.xlu0 %659
          %v662 = vmul.f32 %v633, %v660
          %v663 = vadd.f32 %v657, %v662
          %v664 = vpack.c.bf16 %v663, %v663
          %v665 = vld [vmem:[#allocation8] sm:$0xf]
          %v666 = vld [vmem:[#allocation8 + $0x4] sm:$0xf]
          %v667 = vld [vmem:[#allocation8 + $0x8] sm:$0xf]
          %v668 = vld [vmem:[#allocation8 + $0xc] sm:$0xf]
          %v669 = vld [vmem:[%s11] sm:$0x1]
          %v671 = vperm.slane %v669, 0
          %674 = vrot.lane.b32.xlu0 %v664, 96
          %v675 = vpop.permute.xlu0 %674
          %v680 = vunpack.c.l.b16 %v665
          %v681 = vunpack.c.l.b16 %v666
          %v682 = vunpack.c.l.b16 %v667
          %v683 = vunpack.c.l.b16 %v668
          %v684 = vpack.c.b16 %v681, %v680
          %v685 = vpack.c.b16 %v683, %v682
          %v689 = vsel %vm564, %v675, 0
          %691 = vmatpush.bf16.msra.mxu0 0
          %692 = vmatpush.bf16.msra.mxu0 0
          %693 = vmatpush.bf16.msra.mxu0 0
          %694 = vmatpush.bf16.msra.mxu0 0
          %695 = vmatpush.bf16.msra.mxu0 0
          %696 = vmatpush.bf16.msra.mxu0 0
          %697 = vmatpush.bf16.msra.mxu0 %v685
          %698 = vmatpush.bf16.msra.mxu0 %v684
          %699 = vmatmul.bf16.gmra.mxu0 %v689
          %v700 = vpop.f32.mrf.mxu0
          %v701 = vadd.f32 %v671, %v700
          %v702 = vpop.f32.mrf.mxu0
          %703 = vdwg.mxu0
          %v704 = vld [vmem:[#allocation9] sm:$0xf]
          %v705 = vld [vmem:[#allocation9 + $0x4] sm:$0xf]
          %v706 = vld [vmem:[#allocation9 + $0x8] sm:$0xf]
          %v707 = vld [vmem:[#allocation9 + $0xc] sm:$0xf]
          %v712 = vunpack.c.l.b16 %v704
          %v713 = vunpack.c.l.b16 %v705
          %v714 = vunpack.c.l.b16 %v706
          %v715 = vunpack.c.l.b16 %v707
          %v716 = vpack.c.b16 %v713, %v712
          %v717 = vpack.c.b16 %v715, %v714
          %720 = vmatpush.bf16.msra.mxu0 0
          %721 = vmatpush.bf16.msra.mxu0 0
          %722 = vmatpush.bf16.msra.mxu0 0
          %723 = vmatpush.bf16.msra.mxu0 0
          %724 = vmatpush.bf16.msra.mxu0 0
          %725 = vmatpush.bf16.msra.mxu0 0
          %726 = vmatpush.bf16.msra.mxu0 %v717
          %727 = vmatpush.bf16.msra.mxu0 %v716
          %728 = vmatmul.bf16.gmra.mxu0 %v599
          %v729 = vpop.f32.mrf.mxu0
          %v730 = vadd.f32 0.0, %v729
          %v731 = vpop.f32.mrf.mxu0
          %732 = vdwg.mxu0
          %v733 = vadd.f32 %v701, %v730
          %v734 = vxor.u32 %v733, 2147483648
          %v735 = vmul.f32 %v734, 1.442695
          %v736 = vpow.pop %v735
          %v737 = vadd.f32 %v736, 1.0
          %v738 = vrcp.pop %v737
          %v739 = vmul.f32 %v737, %v738
          %v740 = vsub.f32 1.0, %v739
          %v741 = vmul.f32 %v738, %v740
          %v742 = vadd.f32 %v738, %v741
          %vm743 = vweird.f32 %v737
          %vm744 = vweird.f32 %v738
          %vm745 = vmor %vm743, %vm744
          %v746 = vsel %vm745, %v738, %v742
          %v747 = vand.u32 2147483647, %v737
          %vm748 = vcmp.eq.f32.partialorder %v747, 8.507059e+37
          %v749 = vand.u32 %v737, 2147483648
          %v750 = vor.u32 1.1754944e-38, %v749
          %v751 = vsel %vm748, %v750, %v746
          %v752 = vmul.f32 1.0, %v751
          %v753 = vld [vmem:[%s12] sm:$0x1]
          %v755 = vperm.slane %v753, 0
          %756 = vrot.lane.b32.xlu0 %v755, 64
          %v757 = vpop.permute.xlu0 %756
          %v759 = vadd.f32 %v730, %v757
          %761 = vrot.lane.b32.xlu0 %v759, 64
          %v762 = vpop.permute.xlu0 %761
          %v764 = vmul.f32 %v752, %v762
          %766 = vrot.lane.b32.xlu0 %v764, 64
          %v767 = vpop.permute.xlu0 %766
          %v769 = vadd.f32 %v701, %v767
          %v770 = vtanh.pop %v769
          %v771 = vsub.f32 1.0, %v752
          %773 = vrot.lane.b32.xlu0 %v770, 96
          %v774 = vpop.permute.xlu0 %773
          %v776 = vmul.f32 %v771, %v774
          %v777 = vmul.f32 %v752, %v660
          %v778 = vadd.f32 %v776, %v777
          %780 = vrot.lane.b32.xlu0 %v663, 96
          %v781 = vpop.permute.xlu0 %780
          %783 = vst.msk [vmem:[#allocation2] sm:$0xff] %vm564, %v781
          %785 = vrot.lane.b32.xlu0 %v778, 96
          %v786 = vpop.permute.xlu0 %785
          %s788 = scalar_lea.vmem [#allocation2], 8
          %789 = vst.msk [vmem:[%s788] sm:$0xff] %vm564, %v786
        $region92: #{tpu_custom_call.1} parent=71 // pred_fallthru
          _
        %v790 = vld [vmem:[#allocation2] sm:$0xff]
        %s791 = scalar_lea.vmem [#allocation2], 8
        %v792 = vld [vmem:[%s791] sm:$0xff]
        %v793 = vpack.c.bf16 %v792, %v792
        %v794 = vld [vmem:[%s2] sm:$0xf]
        %v795 = vld [vmem:[%s2 + $0x4] sm:$0xf]
        %v796 = vld [vmem:[%s2 + $0x8] sm:$0xf]
        %v797 = vld [vmem:[%s2 + $0xc] sm:$0xf]
        %v798 = vld [vmem:[%s3] sm:$0x1]
        %v800 = vperm.slane %v798, 0
        %v806 = vunpack.c.l.b16 %v794
        %v807 = vunpack.c.l.b16 %v795
        %v808 = vunpack.c.l.b16 %v796
        %v809 = vunpack.c.l.b16 %v797
        %v810 = vpack.c.b16 %v807, %v806
        %v811 = vpack.c.b16 %v809, %v808
        %vm814 = vcmask 261120
        %v816 = vsel %vm814, %v793, 0
        %818 = vmatpush.bf16.msra.mxu0 0
        %819 = vmatpush.bf16.msra.mxu0 0
        %820 = vmatpush.bf16.msra.mxu0 0
        %821 = vmatpush.bf16.msra.mxu0 0
        %822 = vmatpush.bf16.msra.mxu0 0
        %823 = vmatpush.bf16.msra.mxu0 0
        %824 = vmatpush.bf16.msra.mxu0 %v811
        %825 = vmatpush.bf16.msra.mxu0 %v810
        %826 = vmatmul.bf16.gmra.mxu0 %v816
        %v827 = vpop.f32.mrf.mxu0
        %v828 = vadd.f32 %v800, %v827
        %v829 = vpop.f32.mrf.mxu0
        %830 = vdwg.mxu0
        %v831 = vld [vmem:[%s532] sm:$0xff]
        %v832 = vadd.f32 %v828, %v831
        %v833 = vlaneseq
        %v834 = vand.u32 %v833, 127
        %835 = vmax.xlane.f32.xlu0 %v832
        %v836 = vpop.xlane.xlu0 %835
        %vm837 = vcmp.eq.f32.partialorder %v832, %v836
        %v838 = vsel %vm837, %v834, 128
        %v839 = vand.u32 %v838, 65535
        %v840 = vshra.s32 %v838, 16
        %v841 = vcvt.s32.f32 %v839
        %v842 = vcvt.s32.f32 %v840
        %843 = vmin.xlane.f32.xlu0 %v842
        %v844 = vpop.xlane.xlu0 %843
        %vm845 = vcmp.eq.f32.partialorder %v842, %v844
        %v846 = vsel %vm845, %v841, inf
        %847 = vmin.xlane.f32.xlu0 %v846
        %v848 = vpop.xlane.xlu0 %847
        %v849 = vcvt.f32.s32 %v848
        %v850 = vcvt.f32.s32 %v844
        %v851 = vshll.u32 %v850, 16
        %v852 = vadd.s32 %v851, %v849
        %vm853 = vcmp.eq.s32.totalorder %v834, %v852
        %v854 = vsel %vm853, 1, 0
        %v855 = vcvt.s32.f32 %v854
        %v856 = vpack.c.bf16 %v855, %v855
        %857 = vst [vmem:[%s525] sm:$0xf] %v856
        %v858 = vld [vmem:[%s1] sm:$0xf]
        %v859 = vld [vmem:[%s1 + $0x4] sm:$0xf]
        %v860 = vld [vmem:[%s1 + $0x8] sm:$0xf]
        %v861 = vld [vmem:[%s1 + $0xc] sm:$0xf]
        %v862 = vld [vmem:[%s1 + $0x10] sm:$0xf]
        %v863 = vld [vmem:[%s1 + $0x14] sm:$0xf]
        %v864 = vld [vmem:[%s1 + $0x18] sm:$0xf]
        %v865 = vld [vmem:[%s1 + $0x1c] sm:$0xf]
        %v866 = vld [vmem:[%s1 + $0x20] sm:$0xf]
        %v867 = vld [vmem:[%s1 + $0x24] sm:$0xf]
        %v868 = vld [vmem:[%s1 + $0x28] sm:$0xf]
        %v869 = vld [vmem:[%s1 + $0x2c] sm:$0xf]
        %v870 = vld [vmem:[%s1 + $0x30] sm:$0xf]
        %v871 = vld [vmem:[%s1 + $0x34] sm:$0xf]
        %v872 = vld [vmem:[%s1 + $0x38] sm:$0xf]
        %v873 = vld [vmem:[%s1 + $0x3c] sm:$0xf]
        %v890 = vunpack.c.l.b16 %v858
        %v891 = vunpack.c.l.b16 %v859
        %v892 = vunpack.c.l.b16 %v860
        %v893 = vunpack.c.l.b16 %v861
        %v894 = vunpack.c.l.b16 %v862
        %v895 = vunpack.c.l.b16 %v863
        %v896 = vunpack.c.l.b16 %v864
        %v897 = vunpack.c.l.b16 %v865
        %v898 = vunpack.c.l.b16 %v866
        %v899 = vunpack.c.l.b16 %v867
        %v900 = vunpack.c.l.b16 %v868
        %v901 = vunpack.c.l.b16 %v869
        %v902 = vunpack.c.l.b16 %v870
        %v903 = vunpack.c.l.b16 %v871
        %v904 = vunpack.c.l.b16 %v872
        %v905 = vunpack.c.l.b16 %v873
        %v906 = vpack.c.b16 %v891, %v890
        %v907 = vpack.c.b16 %v893, %v892
        %v908 = vpack.c.b16 %v895, %v894
        %v909 = vpack.c.b16 %v897, %v896
        %v910 = vpack.c.b16 %v899, %v898
        %v911 = vpack.c.b16 %v901, %v900
        %v912 = vpack.c.b16 %v903, %v902
        %v913 = vpack.c.b16 %v905, %v904
        %922 = vmatpush.bf16.msra.mxu0 %v913
        %923 = vmatpush.bf16.msra.mxu0 %v912
        %924 = vmatpush.bf16.msra.mxu0 %v911
        %925 = vmatpush.bf16.msra.mxu0 %v910
        %926 = vmatpush.bf16.msra.mxu0 %v909
        %927 = vmatpush.bf16.msra.mxu0 %v908
        %928 = vmatpush.bf16.msra.mxu0 %v907
        %929 = vmatpush.bf16.msra.mxu0 %v906
        %930 = vmatmul.bf16.gmra.mxu0 %v856
        %v931 = vpop.f32.mrf.mxu0
        %v932 = vadd.f32 0.0, %v931
        %v933 = vpop.f32.mrf.mxu0
        %934 = vdwg.mxu0
        %v935 = vpack.c.bf16 %v932, %v932
        %v936 = vld [vmem:[%s5] sm:$0xf]
        %v937 = vld [vmem:[%s5 + $0x4] sm:$0xf]
        %v938 = vld [vmem:[%s5 + $0x8] sm:$0xf]
        %v939 = vld [vmem:[%s5 + $0xc] sm:$0xf]
        %v940 = vld [vmem:[%s7] sm:$0x1]
        %v942 = vperm.slane %v940, 0
        %v948 = vunpack.c.l.b16 %v936
        %v949 = vunpack.c.l.b16 %v937
        %v950 = vunpack.c.l.b16 %v938
        %v951 = vunpack.c.l.b16 %v939
        %v952 = vpack.c.b16 %v949, %v948
        %v953 = vpack.c.b16 %v951, %v950
        %v957 = vsel %vm814, %v935, 0
        %959 = vmatpush.bf16.msra.mxu0 0
        %960 = vmatpush.bf16.msra.mxu0 0
        %961 = vmatpush.bf16.msra.mxu0 0
        %962 = vmatpush.bf16.msra.mxu0 0
        %963 = vmatpush.bf16.msra.mxu0 0
        %964 = vmatpush.bf16.msra.mxu0 0
        %965 = vmatpush.bf16.msra.mxu0 %v953
        %966 = vmatpush.bf16.msra.mxu0 %v952
        %967 = vmatmul.bf16.gmra.mxu0 %v957
        %v968 = vpop.f32.mrf.mxu0
        %v969 = vadd.f32 %v942, %v968
        %v970 = vpop.f32.mrf.mxu0
        %971 = vdwg.mxu0
        %v972 = vpack.c.bf16 %v790, %v790
        %v973 = vld [vmem:[#allocation6] sm:$0xf]
        %v974 = vld [vmem:[#allocation6 + $0x4] sm:$0xf]
        %v975 = vld [vmem:[#allocation6 + $0x8] sm:$0xf]
        %v976 = vld [vmem:[#allocation6 + $0xc] sm:$0xf]
        %v981 = vunpack.c.l.b16 %v973
        %v982 = vunpack.c.l.b16 %v974
        %v983 = vunpack.c.l.b16 %v975
        %v984 = vunpack.c.l.b16 %v976
        %v985 = vpack.c.b16 %v982, %v981
        %v986 = vpack.c.b16 %v984, %v983
        %v990 = vsel %vm814, %v972, 0
        %992 = vmatpush.bf16.msra.mxu0 0
        %993 = vmatpush.bf16.msra.mxu0 0
        %994 = vmatpush.bf16.msra.mxu0 0
        %995 = vmatpush.bf16.msra.mxu0 0
        %996 = vmatpush.bf16.msra.mxu0 0
        %997 = vmatpush.bf16.msra.mxu0 0
        %998 = vmatpush.bf16.msra.mxu0 %v986
        %999 = vmatpush.bf16.msra.mxu0 %v985
        %1000 = vmatmul.bf16.gmra.mxu0 %v990
        %v1001 = vpop.f32.mrf.mxu0
        %v1002 = vadd.f32 0.0, %v1001
        %v1003 = vpop.f32.mrf.mxu0
        %1004 = vdwg.mxu0
        %v1005 = vadd.f32 %v969, %v1002
        %v1006 = vxor.u32 %v1005, 2147483648
        %v1007 = vmul.f32 %v1006, 1.442695
        %v1008 = vpow.pop %v1007
        %v1009 = vadd.f32 %v1008, 1.0
        %v1010 = vrcp.pop %v1009
        %v1011 = vmul.f32 %v1009, %v1010
        %v1012 = vsub.f32 1.0, %v1011
        %v1013 = vmul.f32 %v1010, %v1012
        %v1014 = vadd.f32 %v1010, %v1013
        %vm1015 = vweird.f32 %v1009
        %vm1016 = vweird.f32 %v1010
        %vm1017 = vmor %vm1015, %vm1016
        %v1018 = vsel %vm1017, %v1010, %v1014
        %v1019 = vand.u32 2147483647, %v1009
        %vm1020 = vcmp.eq.f32.partialorder %v1019, 8.507059e+37
        %v1021 = vand.u32 %v1009, 2147483648
        %v1022 = vor.u32 1.1754944e-38, %v1021
        %v1023 = vsel %vm1020, %v1022, %v1018
        %v1024 = vmul.f32 1.0, %v1023
        %v1025 = vld [vmem:[%s8] sm:$0x1]
        %v1027 = vperm.slane %v1025, 0
        %1028 = vrot.lane.b32.xlu0 %v1027, 64
        %v1029 = vpop.permute.xlu0 %1028
        %v1031 = vadd.f32 %v1002, %v1029
        %1033 = vrot.lane.b32.xlu0 %v1031, 64
        %v1034 = vpop.permute.xlu0 %1033
        %v1036 = vmul.f32 %v1024, %v1034
        %1038 = vrot.lane.b32.xlu0 %v1036, 64
        %v1039 = vpop.permute.xlu0 %1038
        %v1041 = vadd.f32 %v969, %v1039
        %v1042 = vtanh.pop %v1041
        %v1043 = vsub.f32 1.0, %v1024
        %1045 = vrot.lane.b32.xlu0 %v1042, 96
        %v1046 = vpop.permute.xlu0 %1045
        %v1048 = vmul.f32 %v1043, %v1046
        %1050 = vrot.lane.b32.xlu0 %v790, 32
        %v1051 = vpop.permute.xlu0 %1050
        %v1053 = vmul.f32 %v1024, %v1051
        %v1054 = vadd.f32 %v1048, %v1053
        %v1055 = vpack.c.bf16 %v1054, %v1054
        %v1056 = vld [vmem:[#allocation8] sm:$0xf]
        %v1057 = vld [vmem:[#allocation8 + $0x4] sm:$0xf]
        %v1058 = vld [vmem:[#allocation8 + $0x8] sm:$0xf]
        %v1059 = vld [vmem:[#allocation8 + $0xc] sm:$0xf]
        %v1060 = vld [vmem:[%s11] sm:$0x1]
        %v1062 = vperm.slane %v1060, 0
        %1065 = vrot.lane.b32.xlu0 %v1055, 96
        %v1066 = vpop.permute.xlu0 %1065
        %v1071 = vunpack.c.l.b16 %v1056
        %v1072 = vunpack.c.l.b16 %v1057
        %v1073 = vunpack.c.l.b16 %v1058
        %v1074 = vunpack.c.l.b16 %v1059
        %v1075 = vpack.c.b16 %v1072, %v1071
        %v1076 = vpack.c.b16 %v1074, %v1073
        %v1080 = vsel %vm814, %v1066, 0
        %1082 = vmatpush.bf16.msra.mxu0 0
        %1083 = vmatpush.bf16.msra.mxu0 0
        %1084 = vmatpush.bf16.msra.mxu0 0
        %1085 = vmatpush.bf16.msra.mxu0 0
        %1086 = vmatpush.bf16.msra.mxu0 0
        %1087 = vmatpush.bf16.msra.mxu0 0
        %1088 = vmatpush.bf16.msra.mxu0 %v1076
        %1089 = vmatpush.bf16.msra.mxu0 %v1075
        %1090 = vmatmul.bf16.gmra.mxu0 %v1080
        %v1091 = vpop.f32.mrf.mxu0
        %v1092 = vadd.f32 %v1062, %v1091
        %v1093 = vpop.f32.mrf.mxu0
        %1094 = vdwg.mxu0
        %v1095 = vld [vmem:[#allocation9] sm:$0xf]
        %v1096 = vld [vmem:[#allocation9 + $0x4] sm:$0xf]
        %v1097 = vld [vmem:[#allocation9 + $0x8] sm:$0xf]
        %v1098 = vld [vmem:[#allocation9 + $0xc] sm:$0xf]
        %v1103 = vunpack.c.l.b16 %v1095
        %v1104 = vunpack.c.l.b16 %v1096
        %v1105 = vunpack.c.l.b16 %v1097
        %v1106 = vunpack.c.l.b16 %v1098
        %v1107 = vpack.c.b16 %v1104, %v1103
        %v1108 = vpack.c.b16 %v1106, %v1105
        %1111 = vmatpush.bf16.msra.mxu0 0
        %1112 = vmatpush.bf16.msra.mxu0 0
        %1113 = vmatpush.bf16.msra.mxu0 0
        %1114 = vmatpush.bf16.msra.mxu0 0
        %1115 = vmatpush.bf16.msra.mxu0 0
        %1116 = vmatpush.bf16.msra.mxu0 0
        %1117 = vmatpush.bf16.msra.mxu0 %v1108
        %1118 = vmatpush.bf16.msra.mxu0 %v1107
        %1119 = vmatmul.bf16.gmra.mxu0 %v816
        %v1120 = vpop.f32.mrf.mxu0
        %v1121 = vadd.f32 0.0, %v1120
        %v1122 = vpop.f32.mrf.mxu0
        %1123 = vdwg.mxu0
        %v1124 = vadd.f32 %v1092, %v1121
        %v1125 = vxor.u32 %v1124, 2147483648
        %v1126 = vmul.f32 %v1125, 1.442695
        %v1127 = vpow.pop %v1126
        %v1128 = vadd.f32 %v1127, 1.0
        %v1129 = vrcp.pop %v1128
        %v1130 = vmul.f32 %v1128, %v1129
        %v1131 = vsub.f32 1.0, %v1130
        %v1132 = vmul.f32 %v1129, %v1131
        %v1133 = vadd.f32 %v1129, %v1132
        %vm1134 = vweird.f32 %v1128
        %vm1135 = vweird.f32 %v1129
        %vm1136 = vmor %vm1134, %vm1135
        %v1137 = vsel %vm1136, %v1129, %v1133
        %v1138 = vand.u32 2147483647, %v1128
        %vm1139 = vcmp.eq.f32.partialorder %v1138, 8.507059e+37
        %v1140 = vand.u32 %v1128, 2147483648
        %v1141 = vor.u32 1.1754944e-38, %v1140
        %v1142 = vsel %vm1139, %v1141, %v1137
        %v1143 = vmul.f32 1.0, %v1142
        %v1144 = vld [vmem:[%s12] sm:$0x1]
        %v1146 = vperm.slane %v1144, 0
        %1147 = vrot.lane.b32.xlu0 %v1146, 64
        %v1148 = vpop.permute.xlu0 %1147
        %v1150 = vadd.f32 %v1121, %v1148
        %1152 = vrot.lane.b32.xlu0 %v1150, 64
        %v1153 = vpop.permute.xlu0 %1152
        %v1155 = vmul.f32 %v1143, %v1153
        %1157 = vrot.lane.b32.xlu0 %v1155, 64
        %v1158 = vpop.permute.xlu0 %1157
        %v1160 = vadd.f32 %v1092, %v1158
        %v1161 = vtanh.pop %v1160
        %v1162 = vsub.f32 1.0, %v1143
        %1164 = vrot.lane.b32.xlu0 %v1161, 96
        %v1165 = vpop.permute.xlu0 %1164
        %v1167 = vmul.f32 %v1162, %v1165
        %1169 = vrot.lane.b32.xlu0 %v792, 32
        %v1170 = vpop.permute.xlu0 %1169
        %v1172 = vmul.f32 %v1143, %v1170
        %v1173 = vadd.f32 %v1167, %v1172
        %1175 = vrot.lane.b32.xlu0 %v1054, 96
        %v1176 = vpop.permute.xlu0 %1175
        %1178 = vst.msk [vmem:[#allocation2] sm:$0xff] %vm814, %v1176
        %1180 = vrot.lane.b32.xlu0 %v1173, 96
        %v1181 = vpop.permute.xlu0 %1180
        %1183 = vst.msk [vmem:[%s791] sm:$0xff] %vm814, %v1181
        %s1184 = sand.u32 %s337, 1
        %s1185 = scalar_lea.sflag [#allocation5], %s1184
        %s1186 = sand.u32 %s337, 1
        %s1187 = smul.addr %s1186, 4
        %s1188 = scalar_lea.vmem [#allocation11], %s1187
        // Predicated region
        $region93: #{tpu_custom_call.1} parent=71 // pred_check
          %p1189 = pneg %p347
        $region94: #{tpu_custom_call.1} parent=71 // pred_check_branch
          %1191 = sbr.rel (%p1189) target = $region96
        $region95: #{tpu_custom_call.1} parent=71 // pred_region
          %1193 = vsyncadd %s1185, 0
          %s1194 = sadd.s32 %s34, %s35
          %s1195 = smul.addr %s1194, 4
          %s1196 = scalar_lea.hbm %s13, %s1195
          %s1198 = sshll.u32 %s1188, 4
          %s1199 = int_to_ptr.vmem [resolvable:$true] %s1198
          %s1200 = sshll.u32 %s1196, 4
          %s1201 = int_to_ptr.hbm [resolvable:$true] %s1200
          %1203 = dma.vmem_to_hbm [thread:$0]  %s1199, 64, %s1201, %s1185
        $region96: #{tpu_custom_call.1} parent=71 // pred_fallthru
          _
      $region72: #{tpu_custom_call.1} parent=5 // pred_fallthru
        _
      %p1204 = scmp.le.s32.totalorder 2, %s25
      // Predicated region
      $region97: #{tpu_custom_call.1} parent=5 // pred_check
        %p1205 = pneg %p1204
      $region98: #{tpu_custom_call.1} parent=5 // pred_check_branch
        %1207 = sbr.rel (%p1205) target = $region100
      $region99: #{tpu_custom_call.1} parent=5 // pred_region
        %s1208 = ssub.s32 %s25, 2
        // Predicated region
        $region101: #{tpu_custom_call.1} parent=99 // pred_check
          %p1209 = pneg %p353
        $region102: #{tpu_custom_call.1} parent=99 // pred_check_branch
          %1211 = sbr.rel (%p1209) target = $region104
        $region103: #{tpu_custom_call.1} parent=99 // pred_region
          %s1212 = sand.u32 %s338, 1
          %s1213 = scalar_lea.sflag [#allocation5], %s1212
          %s1214 = sand.u32 %s338, 1
          %s1215 = smul.addr %s1214, 4
          %s1216 = scalar_lea.vmem [#allocation11], %s1215
          %1218 = dma.done %s1213, 64
        $region104: #{tpu_custom_call.1} parent=99 // pred_fallthru
          _
      $region100: #{tpu_custom_call.1} parent=5 // pred_fallthru
        _
    $region6: #{tpu_custom_call.1} parent=1 // loop_footer
      %s29 = sadd.s32 1, %s25
    $region7: #{tpu_custom_call.1} parent=1 // loop_footer_branch
      %24 = sbr.rel target = $region3
    $region8: #{tpu_custom_call.1} parent=1 // loop_exit
      _
    %1219 = vsyncpa [#allocation4], 1
    %s1220 = scalar_lea.sflag [#allocation4], 1
    %1221 = vsyncpa %s1220, 1
    %1222 = vsyncpa [#allocation7], 1
    %1223 = vsyncpa [#allocation10], 1
    %1224 = vsyncpa [#allocation5], 1
    %s1225 = scalar_lea.sflag [#allocation5], 1
    %1226 = vsyncpa %s1225, 1

</llo_original>
